<compile_context>
chip_gen: v6e
topology: v6e:2x2x1
jax: 0.10.0
libtpu: 0.0.40
codegen_flags: <defaults>
</compile_context>

<pallas_src>
import jax
import jax.numpy as jnp
from jax.experimental import pallas as pl
from jax.experimental.pallas import tpu as pltpu


# ------------------------------ Pallas kernel --------------------------------

def make_lstm_fc_kernel(T, Bp, H, num_layers):
    """Build the fused kernel for static (T, padded batch Bp, H, num_layers)."""

    def kernel(*args):
        # args = [x, (wih, whh, b) * L, fc_w, fc_b]  +  [out]  +  [seq scratch]
        x_ref = args[0]
        layer_refs = args[1:1 + 3 * num_layers]
        fcw_ref = args[1 + 3 * num_layers]            # (H, C)
        fcb_ref = args[2 + 3 * num_layers]            # (1, C)
        out_ref = args[3 + 3 * num_layers]            # (Bp, C)
        seq_sc = args[4 + 3 * num_layers]             # (T*Bp, H) VMEM scratch

        seq = x_ref[...]                              # (T*Bp, D_in) f32
        h = jnp.zeros((Bp, H), jnp.float32)

        for l in range(num_layers):                   # static, unrolled
            wih_ref = layer_refs[3 * l + 0]           # (D_in, 4H)
            whh_ref = layer_refs[3 * l + 1]           # (H, 4H)
            b_ref = layer_refs[3 * l + 2]             # (1, 4H) = b_ih + b_hh
            last = l == num_layers - 1

            # Input projection + bias for ALL timesteps in one dense MXU pass.
            xg = (
                jnp.dot(seq, wih_ref[...], preferred_element_type=jnp.float32)
                + b_ref[...]
            )                                         # (T*Bp, 4H)

            h = jnp.zeros((Bp, H), jnp.float32)
            c = jnp.zeros((Bp, H), jnp.float32)
            for t in range(T):                        # static, unrolled (T=8)
                gates = xg[t * Bp:(t + 1) * Bp, :] + jnp.dot(
                    h, whh_ref[...], preferred_element_type=jnp.float32)
                # PyTorch gate order: i, f, g, o
                i = jax.nn.sigmoid(gates[:, 0 * H:1 * H])
                f = jax.nn.sigmoid(gates[:, 1 * H:2 * H])
                g = jnp.tanh(gates[:, 2 * H:3 * H])
                o = jax.nn.sigmoid(gates[:, 3 * H:4 * H])
                c = f * c + i * g
                h = o * jnp.tanh(c)
                if not last:
                    seq_sc[t * Bp:(t + 1) * Bp, :] = h    # stays in VMEM
            if not last:
                seq = seq_sc[...]                     # (T*Bp, H) for next layer

        # FC head on the final timestep's hidden state only (== x[:, -1, :]).
        out_ref[...] = (
            jnp.dot(h, fcw_ref[...], preferred_element_type=jnp.float32)
            + fcb_ref[...]
        ).astype(out_ref.dtype)

    return kernel


# --------------------------------- Wrapper ------------------------------------

def lstm_model_forward(x, layer_params, fc_w, fc_b):
    """x: (B, T, input_dim) batch_first, same semantics as the PyTorch module."""
    B, T, D = x.shape
    H = layer_params[0][1].shape[1]                   # whh: (4H, H)
    C = fc_w.shape[0]
    num_layers = len(layer_params)
    Bp = max(8, ((B + 7) // 8) * 8)                   # pad batch to sublane width

    # time-major, batch-padded, flattened to (T*Bp, D) for the fused kernel
    x_tm = jnp.transpose(x, (1, 0, 2)).astype(jnp.float32)      # (T, B, D)
    x_tm = jnp.pad(x_tm, ((0, 0), (0, Bp - B), (0, 0)))         # (T, Bp, D)
    x_flat = x_tm.reshape(T * Bp, D)

    # One-time weight prep: K-major weights with 4H on lanes, fused biases.
    flat_w = []
    for (wih, whh, bih, bhh) in layer_params:
        flat_w.append(jnp.transpose(wih))                       # (D_in, 4H)
        flat_w.append(jnp.transpose(whh))                       # (H, 4H)
        flat_w.append((bih + bhh).reshape(1, -1))               # (1, 4H)

    out = pl.pallas_call(
        make_lstm_fc_kernel(T, Bp, H, num_layers),
        out_shape=jax.ShapeDtypeStruct((Bp, C), jnp.float32),
        scratch_shapes=[pltpu.VMEM((T * Bp, H), jnp.float32)],
    )(x_flat, *flat_w, jnp.transpose(fc_w), fc_b.reshape(1, -1))
    return out[:B]


# ----------------------------- Pure-JAX reference -----------------------------

def lstm_model_reference(x, layer_params, fc_w, fc_b):
    h_seq = x.astype(jnp.float32)
    for (wih, whh, bih, bhh) in layer_params:
        B = h_seq.shape[0]
        H = whh.shape[1]

        def step(carry, x_t):
            h, c = carry
            gates = x_t @ wih.T + bih + h @ whh.T + bhh
            i, f, g, o = jnp.split(gates, 4, axis=-1)
            i, f, o = jax.nn.sigmoid(i), jax.nn.sigmoid(f), jax.nn.sigmoid(o)
            g = jnp.tanh(g)
            c = f * c + i * g
            h = o * jnp.tanh(c)
            return (h, c), h

        init = (jnp.zeros((B, H), jnp.float32), jnp.zeros((B, H), jnp.float32))
        _, hs = jax.lax.scan(step, init, jnp.transpose(h_seq, (1, 0, 2)))
        h_seq = jnp.transpose(hs, (1, 0, 2))
    return h_seq[:, -1, :] @ fc_w.T + fc_b


# ----------------------------------- Main --------------------------------------

if __name__ == "__main__":
    batch, seq_len = 2, 8
    input_dim, hidden_dim, num_layers, num_classes = 16, 32, 2, 10

    key = jax.random.PRNGKey(0)
    bound = 1.0 / jnp.sqrt(hidden_dim)

    # Deterministic PyTorch-style U(-1/sqrt(H), 1/sqrt(H)) init.
    layer_params = []
    for layer in range(num_layers):
        d_in = input_dim if layer == 0 else hidden_dim
        key, k1, k2, k3, k4 = jax.random.split(key, 5)
        wih = jax.random.uniform(k1, (4 * hidden_dim, d_in), jnp.float32, -bound, bound)
        whh = jax.random.uniform(k2, (4 * hidden_dim, hidden_dim), jnp.float32, -bound, bound)
        bih = jax.random.uniform(k3, (4 * hidden_dim,), jnp.float32, -bound, bound)
        bhh = jax.random.uniform(k4, (4 * hidden_dim,), jnp.float32, -bound, bound)
        layer_params.append((wih, whh, bih, bhh))

    key, kf1, kf2, kx = jax.random.split(key, 4)
    fc_w = jax.random.uniform(kf1, (num_classes, hidden_dim), jnp.float32, -bound, bound)
    fc_b = jax.random.uniform(kf2, (num_classes,), jnp.float32, -bound, bound)

    x = jax.random.normal(kx, (batch, seq_len, input_dim), jnp.float32)

    out = jax.jit(lstm_model_forward)(x, layer_params, fc_w, fc_b)
    out = jax.block_until_ready(out)

    ref = lstm_model_reference(x, layer_params, fc_w, fc_b)
    assert out.shape == (batch, num_classes), out.shape
    assert jnp.allclose(out, ref, atol=1e-4, rtol=1e-4), (out, ref)

    print("KERNEL_OK")
</pallas_src>

<mosaic_0001>
module attributes {stable_mosaic.version = 11 : i64} {
  func.func @kernel(%arg0: memref<64x16xf32, #tpu.memory_space<vmem>>, %arg1: memref<16x128xf32, #tpu.memory_space<vmem>>, %arg2: memref<32x128xf32, #tpu.memory_space<vmem>>, %arg3: memref<1x128xf32, #tpu.memory_space<vmem>>, %arg4: memref<32x128xf32, #tpu.memory_space<vmem>>, %arg5: memref<32x128xf32, #tpu.memory_space<vmem>>, %arg6: memref<1x128xf32, #tpu.memory_space<vmem>>, %arg7: memref<32x10xf32, #tpu.memory_space<vmem>>, %arg8: memref<1x10xf32, #tpu.memory_space<vmem>>, %arg9: memref<8x10xf32, #tpu.memory_space<vmem>>, %arg10: memref<64x32xf32, #tpu.memory_space<vmem>>) attributes {dimension_semantics = [], scalar_prefetch = 0 : i64, scratch_operands = 1 : i64, tpu.core_type = #tpu.core_type<tc>} {
    %c0 = arith.constant 0 : index
    %c0_0 = arith.constant 0 : index
    %0 = vector.load %arg0[%c0, %c0_0] : memref<64x16xf32, #tpu.memory_space<vmem>>, vector<64x16xf32>
    %c0_1 = arith.constant 0 : index
    %c0_2 = arith.constant 0 : index
    %1 = vector.load %arg1[%c0_1, %c0_2] : memref<16x128xf32, #tpu.memory_space<vmem>>, vector<16x128xf32>
    %cst = arith.constant dense<0.000000e+00> : vector<64x128xf32>
    %2 = tpu.matmul %0, %1, %cst {dimension_numbers = #tpu.dot_dimension_numbers<[1], [0], [0], [1], [0, 0, 1, 1], [], []>} : vector<64x16xf32>, vector<16x128xf32>, vector<64x128xf32> -> vector<64x128xf32>
    %c0_3 = arith.constant 0 : index
    %c0_4 = arith.constant 0 : index
    %3 = vector.load %arg3[%c0_3, %c0_4] : memref<1x128xf32, #tpu.memory_space<vmem>>, vector<1x128xf32>
    %4 = vector.broadcast %3 : vector<1x128xf32> to vector<64x128xf32>
    %5 = arith.addf %2, %4 : vector<64x128xf32>
    %cst_5 = arith.constant 0.000000e+00 : f32
    %6 = vector.broadcast %cst_5 : f32 to vector<8x32xf32>
    %cst_6 = arith.constant 0.000000e+00 : f32
    %7 = vector.broadcast %cst_6 : f32 to vector<8x32xf32>
    %8 = vector.extract_strided_slice %5 {offsets = [0, 0], sizes = [8, 128], strides = [1, 1]} : vector<64x128xf32> to vector<8x128xf32>
    %c0_7 = arith.constant 0 : index
    %c0_8 = arith.constant 0 : index
    %9 = vector.load %arg2[%c0_7, %c0_8] : memref<32x128xf32, #tpu.memory_space<vmem>>, vector<32x128xf32>
    %cst_9 = arith.constant dense<0.000000e+00> : vector<8x128xf32>
    %10 = tpu.matmul %6, %9, %cst_9 {dimension_numbers = #tpu.dot_dimension_numbers<[1], [0], [0], [1], [0, 0, 1, 1], [], []>} : vector<8x32xf32>, vector<32x128xf32>, vector<8x128xf32> -> vector<8x128xf32>
    %11 = arith.addf %8, %10 : vector<8x128xf32>
    %12 = vector.extract_strided_slice %11 {offsets = [0, 0], sizes = [8, 32], strides = [1, 1]} : vector<8x128xf32> to vector<8x32xf32>
    %13 = arith.negf %12 : vector<8x32xf32>
    %14 = math.exp %13 : vector<8x32xf32>
    %cst_10 = arith.constant 1.000000e+00 : f32
    %15 = vector.broadcast %cst_10 : f32 to vector<8x32xf32>
    %16 = arith.addf %15, %14 : vector<8x32xf32>
    %17 = arith.divf %15, %16 : vector<8x32xf32>
    %18 = vector.extract_strided_slice %11 {offsets = [0, 32], sizes = [8, 32], strides = [1, 1]} : vector<8x128xf32> to vector<8x32xf32>
    %19 = arith.negf %18 : vector<8x32xf32>
    %20 = math.exp %19 : vector<8x32xf32>
    %cst_11 = arith.constant 1.000000e+00 : f32
    %21 = vector.broadcast %cst_11 : f32 to vector<8x32xf32>
    %22 = arith.addf %21, %20 : vector<8x32xf32>
    %23 = arith.divf %21, %22 : vector<8x32xf32>
    %24 = vector.extract_strided_slice %11 {offsets = [0, 64], sizes = [8, 32], strides = [1, 1]} : vector<8x128xf32> to vector<8x32xf32>
    %25 = math.tanh %24 : vector<8x32xf32>
    %26 = vector.extract_strided_slice %11 {offsets = [0, 96], sizes = [8, 32], strides = [1, 1]} : vector<8x128xf32> to vector<8x32xf32>
    %27 = arith.negf %26 : vector<8x32xf32>
    %28 = math.exp %27 : vector<8x32xf32>
    %cst_12 = arith.constant 1.000000e+00 : f32
    %29 = vector.broadcast %cst_12 : f32 to vector<8x32xf32>
    %30 = arith.addf %29, %28 : vector<8x32xf32>
    %31 = arith.divf %29, %30 : vector<8x32xf32>
    %32 = arith.mulf %23, %7 : vector<8x32xf32>
    %33 = arith.mulf %17, %25 : vector<8x32xf32>
    %34 = arith.addf %32, %33 : vector<8x32xf32>
    %35 = math.tanh %34 : vector<8x32xf32>
    %36 = arith.mulf %31, %35 : vector<8x32xf32>
    %c0_13 = arith.constant 0 : index
    %c0_14 = arith.constant 0 : index
    %37 = vector.load %arg10[%c0_13, %c0_14] : memref<64x32xf32, #tpu.memory_space<vmem>>, vector<8x32xf32>
    tpu.vector_store %arg10[%c0_13, %c0_14], %36 {strides = array<i32>} : memref<64x32xf32, #tpu.memory_space<vmem>>, vector<8x32xf32>,
    %38 = vector.extract_strided_slice %5 {offsets = [8, 0], sizes = [8, 128], strides = [1, 1]} : vector<64x128xf32> to vector<8x128xf32>
    %c0_15 = arith.constant 0 : index
    %c0_16 = arith.constant 0 : index
    %39 = vector.load %arg2[%c0_15, %c0_16] : memref<32x128xf32, #tpu.memory_space<vmem>>, vector<32x128xf32>
    %cst_17 = arith.constant dense<0.000000e+00> : vector<8x128xf32>
    %40 = tpu.matmul %36, %39, %cst_17 {dimension_numbers = #tpu.dot_dimension_numbers<[1], [0], [0], [1], [0, 0, 1, 1], [], []>} : vector<8x32xf32>, vector<32x128xf32>, vector<8x128xf32> -> vector<8x128xf32>
    %41 = arith.addf %38, %40 : vector<8x128xf32>
    %42 = vector.extract_strided_slice %41 {offsets = [0, 0], sizes = [8, 32], strides = [1, 1]} : vector<8x128xf32> to vector<8x32xf32>
    %43 = arith.negf %42 : vector<8x32xf32>
    %44 = math.exp %43 : vector<8x32xf32>
    %cst_18 = arith.constant 1.000000e+00 : f32
    %45 = vector.broadcast %cst_18 : f32 to vector<8x32xf32>
    %46 = arith.addf %45, %44 : vector<8x32xf32>
    %47 = arith.divf %45, %46 : vector<8x32xf32>
    %48 = vector.extract_strided_slice %41 {offsets = [0, 32], sizes = [8, 32], strides = [1, 1]} : vector<8x128xf32> to vector<8x32xf32>
    %49 = arith.negf %48 : vector<8x32xf32>
    %50 = math.exp %49 : vector<8x32xf32>
    %cst_19 = arith.constant 1.000000e+00 : f32
    %51 = vector.broadcast %cst_19 : f32 to vector<8x32xf32>
    %52 = arith.addf %51, %50 : vector<8x32xf32>
    %53 = arith.divf %51, %52 : vector<8x32xf32>
    %54 = vector.extract_strided_slice %41 {offsets = [0, 64], sizes = [8, 32], strides = [1, 1]} : vector<8x128xf32> to vector<8x32xf32>
    %55 = math.tanh %54 : vector<8x32xf32>
    %56 = vector.extract_strided_slice %41 {offsets = [0, 96], sizes = [8, 32], strides = [1, 1]} : vector<8x128xf32> to vector<8x32xf32>
    %57 = arith.negf %56 : vector<8x32xf32>
    %58 = math.exp %57 : vector<8x32xf32>
    %cst_20 = arith.constant 1.000000e+00 : f32
    %59 = vector.broadcast %cst_20 : f32 to vector<8x32xf32>
    %60 = arith.addf %59, %58 : vector<8x32xf32>
    %61 = arith.divf %59, %60 : vector<8x32xf32>
    %62 = arith.mulf %53, %34 : vector<8x32xf32>
    %63 = arith.mulf %47, %55 : vector<8x32xf32>
    %64 = arith.addf %62, %63 : vector<8x32xf32>
    %65 = math.tanh %64 : vector<8x32xf32>
    %66 = arith.mulf %61, %65 : vector<8x32xf32>
    %c8 = arith.constant 8 : index
    %c0_21 = arith.constant 0 : index
    %67 = vector.load %arg10[%c8, %c0_21] : memref<64x32xf32, #tpu.memory_space<vmem>>, vector<8x32xf32>
    tpu.vector_store %arg10[%c8, %c0_21], %66 {strides = array<i32>} : memref<64x32xf32, #tpu.memory_space<vmem>>, vector<8x32xf32>,
    %68 = vector.extract_strided_slice %5 {offsets = [16, 0], sizes = [8, 128], strides = [1, 1]} : vector<64x128xf32> to vector<8x128xf32>
    %c0_22 = arith.constant 0 : index
    %c0_23 = arith.constant 0 : index
    %69 = vector.load %arg2[%c0_22, %c0_23] : memref<32x128xf32, #tpu.memory_space<vmem>>, vector<32x128xf32>
    %cst_24 = arith.constant dense<0.000000e+00> : vector<8x128xf32>
    %70 = tpu.matmul %66, %69, %cst_24 {dimension_numbers = #tpu.dot_dimension_numbers<[1], [0], [0], [1], [0, 0, 1, 1], [], []>} : vector<8x32xf32>, vector<32x128xf32>, vector<8x128xf32> -> vector<8x128xf32>
    %71 = arith.addf %68, %70 : vector<8x128xf32>
    %72 = vector.extract_strided_slice %71 {offsets = [0, 0], sizes = [8, 32], strides = [1, 1]} : vector<8x128xf32> to vector<8x32xf32>
    %73 = arith.negf %72 : vector<8x32xf32>
    %74 = math.exp %73 : vector<8x32xf32>
    %cst_25 = arith.constant 1.000000e+00 : f32
    %75 = vector.broadcast %cst_25 : f32 to vector<8x32xf32>
    %76 = arith.addf %75, %74 : vector<8x32xf32>
    %77 = arith.divf %75, %76 : vector<8x32xf32>
    %78 = vector.extract_strided_slice %71 {offsets = [0, 32], sizes = [8, 32], strides = [1, 1]} : vector<8x128xf32> to vector<8x32xf32>
    %79 = arith.negf %78 : vector<8x32xf32>
    %80 = math.exp %79 : vector<8x32xf32>
    %cst_26 = arith.constant 1.000000e+00 : f32
    %81 = vector.broadcast %cst_26 : f32 to vector<8x32xf32>
    %82 = arith.addf %81, %80 : vector<8x32xf32>
    %83 = arith.divf %81, %82 : vector<8x32xf32>
    %84 = vector.extract_strided_slice %71 {offsets = [0, 64], sizes = [8, 32], strides = [1, 1]} : vector<8x128xf32> to vector<8x32xf32>
    %85 = math.tanh %84 : vector<8x32xf32>
    %86 = vector.extract_strided_slice %71 {offsets = [0, 96], sizes = [8, 32], strides = [1, 1]} : vector<8x128xf32> to vector<8x32xf32>
    %87 = arith.negf %86 : vector<8x32xf32>
    %88 = math.exp %87 : vector<8x32xf32>
    %cst_27 = arith.constant 1.000000e+00 : f32
    %89 = vector.broadcast %cst_27 : f32 to vector<8x32xf32>
    %90 = arith.addf %89, %88 : vector<8x32xf32>
    %91 = arith.divf %89, %90 : vector<8x32xf32>
    %92 = arith.mulf %83, %64 : vector<8x32xf32>
    %93 = arith.mulf %77, %85 : vector<8x32xf32>
    %94 = arith.addf %92, %93 : vector<8x32xf32>
    %95 = math.tanh %94 : vector<8x32xf32>
    %96 = arith.mulf %91, %95 : vector<8x32xf32>
    %c16 = arith.constant 16 : index
    %c0_28 = arith.constant 0 : index
    %97 = vector.load %arg10[%c16, %c0_28] : memref<64x32xf32, #tpu.memory_space<vmem>>, vector<8x32xf32>
    tpu.vector_store %arg10[%c16, %c0_28], %96 {strides = array<i32>} : memref<64x32xf32, #tpu.memory_space<vmem>>, vector<8x32xf32>,
    %98 = vector.extract_strided_slice %5 {offsets = [24, 0], sizes = [8, 128], strides = [1, 1]} : vector<64x128xf32> to vector<8x128xf32>
    %c0_29 = arith.constant 0 : index
    %c0_30 = arith.constant 0 : index
    %99 = vector.load %arg2[%c0_29, %c0_30] : memref<32x128xf32, #tpu.memory_space<vmem>>, vector<32x128xf32>
    %cst_31 = arith.constant dense<0.000000e+00> : vector<8x128xf32>
    %100 = tpu.matmul %96, %99, %cst_31 {dimension_numbers = #tpu.dot_dimension_numbers<[1], [0], [0], [1], [0, 0, 1, 1], [], []>} : vector<8x32xf32>, vector<32x128xf32>, vector<8x128xf32> -> vector<8x128xf32>
    %101 = arith.addf %98, %100 : vector<8x128xf32>
    %102 = vector.extract_strided_slice %101 {offsets = [0, 0], sizes = [8, 32], strides = [1, 1]} : vector<8x128xf32> to vector<8x32xf32>
    %103 = arith.negf %102 : vector<8x32xf32>
    %104 = math.exp %103 : vector<8x32xf32>
    %cst_32 = arith.constant 1.000000e+00 : f32
    %105 = vector.broadcast %cst_32 : f32 to vector<8x32xf32>
    %106 = arith.addf %105, %104 : vector<8x32xf32>
    %107 = arith.divf %105, %106 : vector<8x32xf32>
    %108 = vector.extract_strided_slice %101 {offsets = [0, 32], sizes = [8, 32], strides = [1, 1]} : vector<8x128xf32> to vector<8x32xf32>
    %109 = arith.negf %108 : vector<8x32xf32>
    %110 = math.exp %109 : vector<8x32xf32>
    %cst_33 = arith.constant 1.000000e+00 : f32
    %111 = vector.broadcast %cst_33 : f32 to vector<8x32xf32>
    %112 = arith.addf %111, %110 : vector<8x32xf32>
    %113 = arith.divf %111, %112 : vector<8x32xf32>
    %114 = vector.extract_strided_slice %101 {offsets = [0, 64], sizes = [8, 32], strides = [1, 1]} : vector<8x128xf32> to vector<8x32xf32>
    %115 = math.tanh %114 : vector<8x32xf32>
    %116 = vector.extract_strided_slice %101 {offsets = [0, 96], sizes = [8, 32], strides = [1, 1]} : vector<8x128xf32> to vector<8x32xf32>
    %117 = arith.negf %116 : vector<8x32xf32>
    %118 = math.exp %117 : vector<8x32xf32>
    %cst_34 = arith.constant 1.000000e+00 : f32
    %119 = vector.broadcast %cst_34 : f32 to vector<8x32xf32>
    %120 = arith.addf %119, %118 : vector<8x32xf32>
    %121 = arith.divf %119, %120 : vector<8x32xf32>
    %122 = arith.mulf %113, %94 : vector<8x32xf32>
    %123 = arith.mulf %107, %115 : vector<8x32xf32>
    %124 = arith.addf %122, %123 : vector<8x32xf32>
    %125 = math.tanh %124 : vector<8x32xf32>
    %126 = arith.mulf %121, %125 : vector<8x32xf32>
    %c24 = arith.constant 24 : index
    %c0_35 = arith.constant 0 : index
    %127 = vector.load %arg10[%c24, %c0_35] : memref<64x32xf32, #tpu.memory_space<vmem>>, vector<8x32xf32>
    tpu.vector_store %arg10[%c24, %c0_35], %126 {strides = array<i32>} : memref<64x32xf32, #tpu.memory_space<vmem>>, vector<8x32xf32>,
    %128 = vector.extract_strided_slice %5 {offsets = [32, 0], sizes = [8, 128], strides = [1, 1]} : vector<64x128xf32> to vector<8x128xf32>
    %c0_36 = arith.constant 0 : index
    %c0_37 = arith.constant 0 : index
    %129 = vector.load %arg2[%c0_36, %c0_37] : memref<32x128xf32, #tpu.memory_space<vmem>>, vector<32x128xf32>
    %cst_38 = arith.constant dense<0.000000e+00> : vector<8x128xf32>
    %130 = tpu.matmul %126, %129, %cst_38 {dimension_numbers = #tpu.dot_dimension_numbers<[1], [0], [0], [1], [0, 0, 1, 1], [], []>} : vector<8x32xf32>, vector<32x128xf32>, vector<8x128xf32> -> vector<8x128xf32>
    %131 = arith.addf %128, %130 : vector<8x128xf32>
    %132 = vector.extract_strided_slice %131 {offsets = [0, 0], sizes = [8, 32], strides = [1, 1]} : vector<8x128xf32> to vector<8x32xf32>
    %133 = arith.negf %132 : vector<8x32xf32>
    %134 = math.exp %133 : vector<8x32xf32>
    %cst_39 = arith.constant 1.000000e+00 : f32
    %135 = vector.broadcast %cst_39 : f32 to vector<8x32xf32>
    %136 = arith.addf %135, %134 : vector<8x32xf32>
    %137 = arith.divf %135, %136 : vector<8x32xf32>
    %138 = vector.extract_strided_slice %131 {offsets = [0, 32], sizes = [8, 32], strides = [1, 1]} : vector<8x128xf32> to vector<8x32xf32>
    %139 = arith.negf %138 : vector<8x32xf32>
    %140 = math.exp %139 : vector<8x32xf32>
    %cst_40 = arith.constant 1.000000e+00 : f32
    %141 = vector.broadcast %cst_40 : f32 to vector<8x32xf32>
    %142 = arith.addf %141, %140 : vector<8x32xf32>
    %143 = arith.divf %141, %142 : vector<8x32xf32>
    %144 = vector.extract_strided_slice %131 {offsets = [0, 64], sizes = [8, 32], strides = [1, 1]} : vector<8x128xf32> to vector<8x32xf32>
    %145 = math.tanh %144 : vector<8x32xf32>
    %146 = vector.extract_strided_slice %131 {offsets = [0, 96], sizes = [8, 32], strides = [1, 1]} : vector<8x128xf32> to vector<8x32xf32>
    %147 = arith.negf %146 : vector<8x32xf32>
    %148 = math.exp %147 : vector<8x32xf32>
    %cst_41 = arith.constant 1.000000e+00 : f32
    %149 = vector.broadcast %cst_41 : f32 to vector<8x32xf32>
    %150 = arith.addf %149, %148 : vector<8x32xf32>
    %151 = arith.divf %149, %150 : vector<8x32xf32>
    %152 = arith.mulf %143, %124 : vector<8x32xf32>
    %153 = arith.mulf %137, %145 : vector<8x32xf32>
    %154 = arith.addf %152, %153 : vector<8x32xf32>
    %155 = math.tanh %154 : vector<8x32xf32>
    %156 = arith.mulf %151, %155 : vector<8x32xf32>
    %c32 = arith.constant 32 : index
    %c0_42 = arith.constant 0 : index
    %157 = vector.load %arg10[%c32, %c0_42] : memref<64x32xf32, #tpu.memory_space<vmem>>, vector<8x32xf32>
    tpu.vector_store %arg10[%c32, %c0_42], %156 {strides = array<i32>} : memref<64x32xf32, #tpu.memory_space<vmem>>, vector<8x32xf32>,
    %158 = vector.extract_strided_slice %5 {offsets = [40, 0], sizes = [8, 128], strides = [1, 1]} : vector<64x128xf32> to vector<8x128xf32>
    %c0_43 = arith.constant 0 : index
    %c0_44 = arith.constant 0 : index
    %159 = vector.load %arg2[%c0_43, %c0_44] : memref<32x128xf32, #tpu.memory_space<vmem>>, vector<32x128xf32>
    %cst_45 = arith.constant dense<0.000000e+00> : vector<8x128xf32>
    %160 = tpu.matmul %156, %159, %cst_45 {dimension_numbers = #tpu.dot_dimension_numbers<[1], [0], [0], [1], [0, 0, 1, 1], [], []>} : vector<8x32xf32>, vector<32x128xf32>, vector<8x128xf32> -> vector<8x128xf32>
    %161 = arith.addf %158, %160 : vector<8x128xf32>
    %162 = vector.extract_strided_slice %161 {offsets = [0, 0], sizes = [8, 32], strides = [1, 1]} : vector<8x128xf32> to vector<8x32xf32>
    %163 = arith.negf %162 : vector<8x32xf32>
    %164 = math.exp %163 : vector<8x32xf32>
    %cst_46 = arith.constant 1.000000e+00 : f32
    %165 = vector.broadcast %cst_46 : f32 to vector<8x32xf32>
    %166 = arith.addf %165, %164 : vector<8x32xf32>
    %167 = arith.divf %165, %166 : vector<8x32xf32>
    %168 = vector.extract_strided_slice %161 {offsets = [0, 32], sizes = [8, 32], strides = [1, 1]} : vector<8x128xf32> to vector<8x32xf32>
    %169 = arith.negf %168 : vector<8x32xf32>
    %170 = math.exp %169 : vector<8x32xf32>
    %cst_47 = arith.constant 1.000000e+00 : f32
    %171 = vector.broadcast %cst_47 : f32 to vector<8x32xf32>
    %172 = arith.addf %171, %170 : vector<8x32xf32>
    %173 = arith.divf %171, %172 : vector<8x32xf32>
    %174 = vector.extract_strided_slice %161 {offsets = [0, 64], sizes = [8, 32], strides = [1, 1]} : vector<8x128xf32> to vector<8x32xf32>
    %175 = math.tanh %174 : vector<8x32xf32>
    %176 = vector.extract_strided_slice %161 {offsets = [0, 96], sizes = [8, 32], strides = [1, 1]} : vector<8x128xf32> to vector<8x32xf32>
    %177 = arith.negf %176 : vector<8x32xf32>
    %178 = math.exp %177 : vector<8x32xf32>
    %cst_48 = arith.constant 1.000000e+00 : f32
    %179 = vector.broadcast %cst_48 : f32 to vector<8x32xf32>
    %180 = arith.addf %179, %178 : vector<8x32xf32>
    %181 = arith.divf %179, %180 : vector<8x32xf32>
    %182 = arith.mulf %173, %154 : vector<8x32xf32>
    %183 = arith.mulf %167, %175 : vector<8x32xf32>
    %184 = arith.addf %182, %183 : vector<8x32xf32>
    %185 = math.tanh %184 : vector<8x32xf32>
    %186 = arith.mulf %181, %185 : vector<8x32xf32>
    %c40 = arith.constant 40 : index
    %c0_49 = arith.constant 0 : index
    %187 = vector.load %arg10[%c40, %c0_49] : memref<64x32xf32, #tpu.memory_space<vmem>>, vector<8x32xf32>
    tpu.vector_store %arg10[%c40, %c0_49], %186 {strides = array<i32>} : memref<64x32xf32, #tpu.memory_space<vmem>>, vector<8x32xf32>,
    %188 = vector.extract_strided_slice %5 {offsets = [48, 0], sizes = [8, 128], strides = [1, 1]} : vector<64x128xf32> to vector<8x128xf32>
    %c0_50 = arith.constant 0 : index
    %c0_51 = arith.constant 0 : index
    %189 = vector.load %arg2[%c0_50, %c0_51] : memref<32x128xf32, #tpu.memory_space<vmem>>, vector<32x128xf32>
    %cst_52 = arith.constant dense<0.000000e+00> : vector<8x128xf32>
    %190 = tpu.matmul %186, %189, %cst_52 {dimension_numbers = #tpu.dot_dimension_numbers<[1], [0], [0], [1], [0, 0, 1, 1], [], []>} : vector<8x32xf32>, vector<32x128xf32>, vector<8x128xf32> -> vector<8x128xf32>
    %191 = arith.addf %188, %190 : vector<8x128xf32>
    %192 = vector.extract_strided_slice %191 {offsets = [0, 0], sizes = [8, 32], strides = [1, 1]} : vector<8x128xf32> to vector<8x32xf32>
    %193 = arith.negf %192 : vector<8x32xf32>
    %194 = math.exp %193 : vector<8x32xf32>
    %cst_53 = arith.constant 1.000000e+00 : f32
    %195 = vector.broadcast %cst_53 : f32 to vector<8x32xf32>
    %196 = arith.addf %195, %194 : vector<8x32xf32>
    %197 = arith.divf %195, %196 : vector<8x32xf32>
    %198 = vector.extract_strided_slice %191 {offsets = [0, 32], sizes = [8, 32], strides = [1, 1]} : vector<8x128xf32> to vector<8x32xf32>
    %199 = arith.negf %198 : vector<8x32xf32>
    %200 = math.exp %199 : vector<8x32xf32>
    %cst_54 = arith.constant 1.000000e+00 : f32
    %201 = vector.broadcast %cst_54 : f32 to vector<8x32xf32>
    %202 = arith.addf %201, %200 : vector<8x32xf32>
    %203 = arith.divf %201, %202 : vector<8x32xf32>
    %204 = vector.extract_strided_slice %191 {offsets = [0, 64], sizes = [8, 32], strides = [1, 1]} : vector<8x128xf32> to vector<8x32xf32>
    %205 = math.tanh %204 : vector<8x32xf32>
    %206 = vector.extract_strided_slice %191 {offsets = [0, 96], sizes = [8, 32], strides = [1, 1]} : vector<8x128xf32> to vector<8x32xf32>
    %207 = arith.negf %206 : vector<8x32xf32>
    %208 = math.exp %207 : vector<8x32xf32>
    %cst_55 = arith.constant 1.000000e+00 : f32
    %209 = vector.broadcast %cst_55 : f32 to vector<8x32xf32>
    %210 = arith.addf %209, %208 : vector<8x32xf32>
    %211 = arith.divf %209, %210 : vector<8x32xf32>
    %212 = arith.mulf %203, %184 : vector<8x32xf32>
    %213 = arith.mulf %197, %205 : vector<8x32xf32>
    %214 = arith.addf %212, %213 : vector<8x32xf32>
    %215 = math.tanh %214 : vector<8x32xf32>
    %216 = arith.mulf %211, %215 : vector<8x32xf32>
    %c48 = arith.constant 48 : index
    %c0_56 = arith.constant 0 : index
    %217 = vector.load %arg10[%c48, %c0_56] : memref<64x32xf32, #tpu.memory_space<vmem>>, vector<8x32xf32>
    tpu.vector_store %arg10[%c48, %c0_56], %216 {strides = array<i32>} : memref<64x32xf32, #tpu.memory_space<vmem>>, vector<8x32xf32>,
    %218 = vector.extract_strided_slice %5 {offsets = [56, 0], sizes = [8, 128], strides = [1, 1]} : vector<64x128xf32> to vector<8x128xf32>
    %c0_57 = arith.constant 0 : index
    %c0_58 = arith.constant 0 : index
    %219 = vector.load %arg2[%c0_57, %c0_58] : memref<32x128xf32, #tpu.memory_space<vmem>>, vector<32x128xf32>
    %cst_59 = arith.constant dense<0.000000e+00> : vector<8x128xf32>
    %220 = tpu.matmul %216, %219, %cst_59 {dimension_numbers = #tpu.dot_dimension_numbers<[1], [0], [0], [1], [0, 0, 1, 1], [], []>} : vector<8x32xf32>, vector<32x128xf32>, vector<8x128xf32> -> vector<8x128xf32>
    %221 = arith.addf %218, %220 : vector<8x128xf32>
    %222 = vector.extract_strided_slice %221 {offsets = [0, 0], sizes = [8, 32], strides = [1, 1]} : vector<8x128xf32> to vector<8x32xf32>
    %223 = arith.negf %222 : vector<8x32xf32>
    %224 = math.exp %223 : vector<8x32xf32>
    %cst_60 = arith.constant 1.000000e+00 : f32
    %225 = vector.broadcast %cst_60 : f32 to vector<8x32xf32>
    %226 = arith.addf %225, %224 : vector<8x32xf32>
    %227 = arith.divf %225, %226 : vector<8x32xf32>
    %228 = vector.extract_strided_slice %221 {offsets = [0, 32], sizes = [8, 32], strides = [1, 1]} : vector<8x128xf32> to vector<8x32xf32>
    %229 = arith.negf %228 : vector<8x32xf32>
    %230 = math.exp %229 : vector<8x32xf32>
    %cst_61 = arith.constant 1.000000e+00 : f32
    %231 = vector.broadcast %cst_61 : f32 to vector<8x32xf32>
    %232 = arith.addf %231, %230 : vector<8x32xf32>
    %233 = arith.divf %231, %232 : vector<8x32xf32>
    %234 = vector.extract_strided_slice %221 {offsets = [0, 64], sizes = [8, 32], strides = [1, 1]} : vector<8x128xf32> to vector<8x32xf32>
    %235 = math.tanh %234 : vector<8x32xf32>
    %236 = vector.extract_strided_slice %221 {offsets = [0, 96], sizes = [8, 32], strides = [1, 1]} : vector<8x128xf32> to vector<8x32xf32>
    %237 = arith.negf %236 : vector<8x32xf32>
    %238 = math.exp %237 : vector<8x32xf32>
    %cst_62 = arith.constant 1.000000e+00 : f32
    %239 = vector.broadcast %cst_62 : f32 to vector<8x32xf32>
    %240 = arith.addf %239, %238 : vector<8x32xf32>
    %241 = arith.divf %239, %240 : vector<8x32xf32>
    %242 = arith.mulf %233, %214 : vector<8x32xf32>
    %243 = arith.mulf %227, %235 : vector<8x32xf32>
    %244 = arith.addf %242, %243 : vector<8x32xf32>
    %245 = math.tanh %244 : vector<8x32xf32>
    %246 = arith.mulf %241, %245 : vector<8x32xf32>
    %c56 = arith.constant 56 : index
    %c0_63 = arith.constant 0 : index
    %247 = vector.load %arg10[%c56, %c0_63] : memref<64x32xf32, #tpu.memory_space<vmem>>, vector<8x32xf32>
    tpu.vector_store %arg10[%c56, %c0_63], %246 {strides = array<i32>} : memref<64x32xf32, #tpu.memory_space<vmem>>, vector<8x32xf32>,
    %c0_64 = arith.constant 0 : index
    %c0_65 = arith.constant 0 : index
    %248 = vector.load %arg10[%c0_64, %c0_65] : memref<64x32xf32, #tpu.memory_space<vmem>>, vector<64x32xf32>
    %c0_66 = arith.constant 0 : index
    %c0_67 = arith.constant 0 : index
    %249 = vector.load %arg4[%c0_66, %c0_67] : memref<32x128xf32, #tpu.memory_space<vmem>>, vector<32x128xf32>
    %cst_68 = arith.constant dense<0.000000e+00> : vector<64x128xf32>
    %250 = tpu.matmul %248, %249, %cst_68 {dimension_numbers = #tpu.dot_dimension_numbers<[1], [0], [0], [1], [0, 0, 1, 1], [], []>} : vector<64x32xf32>, vector<32x128xf32>, vector<64x128xf32> -> vector<64x128xf32>
    %c0_69 = arith.constant 0 : index
    %c0_70 = arith.constant 0 : index
    %251 = vector.load %arg6[%c0_69, %c0_70] : memref<1x128xf32, #tpu.memory_space<vmem>>, vector<1x128xf32>
    %252 = vector.broadcast %251 : vector<1x128xf32> to vector<64x128xf32>
    %253 = arith.addf %250, %252 : vector<64x128xf32>
    %cst_71 = arith.constant 0.000000e+00 : f32
    %254 = vector.broadcast %cst_71 : f32 to vector<8x32xf32>
    %cst_72 = arith.constant 0.000000e+00 : f32
    %255 = vector.broadcast %cst_72 : f32 to vector<8x32xf32>
    %256 = vector.extract_strided_slice %253 {offsets = [0, 0], sizes = [8, 128], strides = [1, 1]} : vector<64x128xf32> to vector<8x128xf32>
    %c0_73 = arith.constant 0 : index
    %c0_74 = arith.constant 0 : index
    %257 = vector.load %arg5[%c0_73, %c0_74] : memref<32x128xf32, #tpu.memory_space<vmem>>, vector<32x128xf32>
    %cst_75 = arith.constant dense<0.000000e+00> : vector<8x128xf32>
    %258 = tpu.matmul %254, %257, %cst_75 {dimension_numbers = #tpu.dot_dimension_numbers<[1], [0], [0], [1], [0, 0, 1, 1], [], []>} : vector<8x32xf32>, vector<32x128xf32>, vector<8x128xf32> -> vector<8x128xf32>
    %259 = arith.addf %256, %258 : vector<8x128xf32>
    %260 = vector.extract_strided_slice %259 {offsets = [0, 0], sizes = [8, 32], strides = [1, 1]} : vector<8x128xf32> to vector<8x32xf32>
    %261 = arith.negf %260 : vector<8x32xf32>
    %262 = math.exp %261 : vector<8x32xf32>
    %cst_76 = arith.constant 1.000000e+00 : f32
    %263 = vector.broadcast %cst_76 : f32 to vector<8x32xf32>
    %264 = arith.addf %263, %262 : vector<8x32xf32>
    %265 = arith.divf %263, %264 : vector<8x32xf32>
    %266 = vector.extract_strided_slice %259 {offsets = [0, 32], sizes = [8, 32], strides = [1, 1]} : vector<8x128xf32> to vector<8x32xf32>
    %267 = arith.negf %266 : vector<8x32xf32>
    %268 = math.exp %267 : vector<8x32xf32>
    %cst_77 = arith.constant 1.000000e+00 : f32
    %269 = vector.broadcast %cst_77 : f32 to vector<8x32xf32>
    %270 = arith.addf %269, %268 : vector<8x32xf32>
    %271 = arith.divf %269, %270 : vector<8x32xf32>
    %272 = vector.extract_strided_slice %259 {offsets = [0, 64], sizes = [8, 32], strides = [1, 1]} : vector<8x128xf32> to vector<8x32xf32>
    %273 = math.tanh %272 : vector<8x32xf32>
    %274 = vector.extract_strided_slice %259 {offsets = [0, 96], sizes = [8, 32], strides = [1, 1]} : vector<8x128xf32> to vector<8x32xf32>
    %275 = arith.negf %274 : vector<8x32xf32>
    %276 = math.exp %275 : vector<8x32xf32>
    %cst_78 = arith.constant 1.000000e+00 : f32
    %277 = vector.broadcast %cst_78 : f32 to vector<8x32xf32>
    %278 = arith.addf %277, %276 : vector<8x32xf32>
    %279 = arith.divf %277, %278 : vector<8x32xf32>
    %280 = arith.mulf %271, %255 : vector<8x32xf32>
    %281 = arith.mulf %265, %273 : vector<8x32xf32>
    %282 = arith.addf %280, %281 : vector<8x32xf32>
    %283 = math.tanh %282 : vector<8x32xf32>
    %284 = arith.mulf %279, %283 : vector<8x32xf32>
    %285 = vector.extract_strided_slice %253 {offsets = [8, 0], sizes = [8, 128], strides = [1, 1]} : vector<64x128xf32> to vector<8x128xf32>
    %c0_79 = arith.constant 0 : index
    %c0_80 = arith.constant 0 : index
    %286 = vector.load %arg5[%c0_79, %c0_80] : memref<32x128xf32, #tpu.memory_space<vmem>>, vector<32x128xf32>
    %cst_81 = arith.constant dense<0.000000e+00> : vector<8x128xf32>
    %287 = tpu.matmul %284, %286, %cst_81 {dimension_numbers = #tpu.dot_dimension_numbers<[1], [0], [0], [1], [0, 0, 1, 1], [], []>} : vector<8x32xf32>, vector<32x128xf32>, vector<8x128xf32> -> vector<8x128xf32>
    %288 = arith.addf %285, %287 : vector<8x128xf32>
    %289 = vector.extract_strided_slice %288 {offsets = [0, 0], sizes = [8, 32], strides = [1, 1]} : vector<8x128xf32> to vector<8x32xf32>
    %290 = arith.negf %289 : vector<8x32xf32>
    %291 = math.exp %290 : vector<8x32xf32>
    %cst_82 = arith.constant 1.000000e+00 : f32
    %292 = vector.broadcast %cst_82 : f32 to vector<8x32xf32>
    %293 = arith.addf %292, %291 : vector<8x32xf32>
    %294 = arith.divf %292, %293 : vector<8x32xf32>
    %295 = vector.extract_strided_slice %288 {offsets = [0, 32], sizes = [8, 32], strides = [1, 1]} : vector<8x128xf32> to vector<8x32xf32>
    %296 = arith.negf %295 : vector<8x32xf32>
    %297 = math.exp %296 : vector<8x32xf32>
    %cst_83 = arith.constant 1.000000e+00 : f32
    %298 = vector.broadcast %cst_83 : f32 to vector<8x32xf32>
    %299 = arith.addf %298, %297 : vector<8x32xf32>
    %300 = arith.divf %298, %299 : vector<8x32xf32>
    %301 = vector.extract_strided_slice %288 {offsets = [0, 64], sizes = [8, 32], strides = [1, 1]} : vector<8x128xf32> to vector<8x32xf32>
    %302 = math.tanh %301 : vector<8x32xf32>
    %303 = vector.extract_strided_slice %288 {offsets = [0, 96], sizes = [8, 32], strides = [1, 1]} : vector<8x128xf32> to vector<8x32xf32>
    %304 = arith.negf %303 : vector<8x32xf32>
    %305 = math.exp %304 : vector<8x32xf32>
    %cst_84 = arith.constant 1.000000e+00 : f32
    %306 = vector.broadcast %cst_84 : f32 to vector<8x32xf32>
    %307 = arith.addf %306, %305 : vector<8x32xf32>
    %308 = arith.divf %306, %307 : vector<8x32xf32>
    %309 = arith.mulf %300, %282 : vector<8x32xf32>
    %310 = arith.mulf %294, %302 : vector<8x32xf32>
    %311 = arith.addf %309, %310 : vector<8x32xf32>
    %312 = math.tanh %311 : vector<8x32xf32>
    %313 = arith.mulf %308, %312 : vector<8x32xf32>
    %314 = vector.extract_strided_slice %253 {offsets = [16, 0], sizes = [8, 128], strides = [1, 1]} : vector<64x128xf32> to vector<8x128xf32>
    %c0_85 = arith.constant 0 : index
    %c0_86 = arith.constant 0 : index
    %315 = vector.load %arg5[%c0_85, %c0_86] : memref<32x128xf32, #tpu.memory_space<vmem>>, vector<32x128xf32>
    %cst_87 = arith.constant dense<0.000000e+00> : vector<8x128xf32>
    %316 = tpu.matmul %313, %315, %cst_87 {dimension_numbers = #tpu.dot_dimension_numbers<[1], [0], [0], [1], [0, 0, 1, 1], [], []>} : vector<8x32xf32>, vector<32x128xf32>, vector<8x128xf32> -> vector<8x128xf32>
    %317 = arith.addf %314, %316 : vector<8x128xf32>
    %318 = vector.extract_strided_slice %317 {offsets = [0, 0], sizes = [8, 32], strides = [1, 1]} : vector<8x128xf32> to vector<8x32xf32>
    %319 = arith.negf %318 : vector<8x32xf32>
    %320 = math.exp %319 : vector<8x32xf32>
    %cst_88 = arith.constant 1.000000e+00 : f32
    %321 = vector.broadcast %cst_88 : f32 to vector<8x32xf32>
    %322 = arith.addf %321, %320 : vector<8x32xf32>
    %323 = arith.divf %321, %322 : vector<8x32xf32>
    %324 = vector.extract_strided_slice %317 {offsets = [0, 32], sizes = [8, 32], strides = [1, 1]} : vector<8x128xf32> to vector<8x32xf32>
    %325 = arith.negf %324 : vector<8x32xf32>
    %326 = math.exp %325 : vector<8x32xf32>
    %cst_89 = arith.constant 1.000000e+00 : f32
    %327 = vector.broadcast %cst_89 : f32 to vector<8x32xf32>
    %328 = arith.addf %327, %326 : vector<8x32xf32>
    %329 = arith.divf %327, %328 : vector<8x32xf32>
    %330 = vector.extract_strided_slice %317 {offsets = [0, 64], sizes = [8, 32], strides = [1, 1]} : vector<8x128xf32> to vector<8x32xf32>
    %331 = math.tanh %330 : vector<8x32xf32>
    %332 = vector.extract_strided_slice %317 {offsets = [0, 96], sizes = [8, 32], strides = [1, 1]} : vector<8x128xf32> to vector<8x32xf32>
    %333 = arith.negf %332 : vector<8x32xf32>
    %334 = math.exp %333 : vector<8x32xf32>
    %cst_90 = arith.constant 1.000000e+00 : f32
    %335 = vector.broadcast %cst_90 : f32 to vector<8x32xf32>
    %336 = arith.addf %335, %334 : vector<8x32xf32>
    %337 = arith.divf %335, %336 : vector<8x32xf32>
    %338 = arith.mulf %329, %311 : vector<8x32xf32>
    %339 = arith.mulf %323, %331 : vector<8x32xf32>
    %340 = arith.addf %338, %339 : vector<8x32xf32>
    %341 = math.tanh %340 : vector<8x32xf32>
    %342 = arith.mulf %337, %341 : vector<8x32xf32>
    %343 = vector.extract_strided_slice %253 {offsets = [24, 0], sizes = [8, 128], strides = [1, 1]} : vector<64x128xf32> to vector<8x128xf32>
    %c0_91 = arith.constant 0 : index
    %c0_92 = arith.constant 0 : index
    %344 = vector.load %arg5[%c0_91, %c0_92] : memref<32x128xf32, #tpu.memory_space<vmem>>, vector<32x128xf32>
    %cst_93 = arith.constant dense<0.000000e+00> : vector<8x128xf32>
    %345 = tpu.matmul %342, %344, %cst_93 {dimension_numbers = #tpu.dot_dimension_numbers<[1], [0], [0], [1], [0, 0, 1, 1], [], []>} : vector<8x32xf32>, vector<32x128xf32>, vector<8x128xf32> -> vector<8x128xf32>
    %346 = arith.addf %343, %345 : vector<8x128xf32>
    %347 = vector.extract_strided_slice %346 {offsets = [0, 0], sizes = [8, 32], strides = [1, 1]} : vector<8x128xf32> to vector<8x32xf32>
    %348 = arith.negf %347 : vector<8x32xf32>
    %349 = math.exp %348 : vector<8x32xf32>
    %cst_94 = arith.constant 1.000000e+00 : f32
    %350 = vector.broadcast %cst_94 : f32 to vector<8x32xf32>
    %351 = arith.addf %350, %349 : vector<8x32xf32>
    %352 = arith.divf %350, %351 : vector<8x32xf32>
    %353 = vector.extract_strided_slice %346 {offsets = [0, 32], sizes = [8, 32], strides = [1, 1]} : vector<8x128xf32> to vector<8x32xf32>
    %354 = arith.negf %353 : vector<8x32xf32>
    %355 = math.exp %354 : vector<8x32xf32>
    %cst_95 = arith.constant 1.000000e+00 : f32
    %356 = vector.broadcast %cst_95 : f32 to vector<8x32xf32>
    %357 = arith.addf %356, %355 : vector<8x32xf32>
    %358 = arith.divf %356, %357 : vector<8x32xf32>
    %359 = vector.extract_strided_slice %346 {offsets = [0, 64], sizes = [8, 32], strides = [1, 1]} : vector<8x128xf32> to vector<8x32xf32>
    %360 = math.tanh %359 : vector<8x32xf32>
    %361 = vector.extract_strided_slice %346 {offsets = [0, 96], sizes = [8, 32], strides = [1, 1]} : vector<8x128xf32> to vector<8x32xf32>
    %362 = arith.negf %361 : vector<8x32xf32>
    %363 = math.exp %362 : vector<8x32xf32>
    %cst_96 = arith.constant 1.000000e+00 : f32
    %364 = vector.broadcast %cst_96 : f32 to vector<8x32xf32>
    %365 = arith.addf %364, %363 : vector<8x32xf32>
    %366 = arith.divf %364, %365 : vector<8x32xf32>
    %367 = arith.mulf %358, %340 : vector<8x32xf32>
    %368 = arith.mulf %352, %360 : vector<8x32xf32>
    %369 = arith.addf %367, %368 : vector<8x32xf32>
    %370 = math.tanh %369 : vector<8x32xf32>
    %371 = arith.mulf %366, %370 : vector<8x32xf32>
    %372 = vector.extract_strided_slice %253 {offsets = [32, 0], sizes = [8, 128], strides = [1, 1]} : vector<64x128xf32> to vector<8x128xf32>
    %c0_97 = arith.constant 0 : index
    %c0_98 = arith.constant 0 : index
    %373 = vector.load %arg5[%c0_97, %c0_98] : memref<32x128xf32, #tpu.memory_space<vmem>>, vector<32x128xf32>
    %cst_99 = arith.constant dense<0.000000e+00> : vector<8x128xf32>
    %374 = tpu.matmul %371, %373, %cst_99 {dimension_numbers = #tpu.dot_dimension_numbers<[1], [0], [0], [1], [0, 0, 1, 1], [], []>} : vector<8x32xf32>, vector<32x128xf32>, vector<8x128xf32> -> vector<8x128xf32>
    %375 = arith.addf %372, %374 : vector<8x128xf32>
    %376 = vector.extract_strided_slice %375 {offsets = [0, 0], sizes = [8, 32], strides = [1, 1]} : vector<8x128xf32> to vector<8x32xf32>
    %377 = arith.negf %376 : vector<8x32xf32>
    %378 = math.exp %377 : vector<8x32xf32>
    %cst_100 = arith.constant 1.000000e+00 : f32
    %379 = vector.broadcast %cst_100 : f32 to vector<8x32xf32>
    %380 = arith.addf %379, %378 : vector<8x32xf32>
    %381 = arith.divf %379, %380 : vector<8x32xf32>
    %382 = vector.extract_strided_slice %375 {offsets = [0, 32], sizes = [8, 32], strides = [1, 1]} : vector<8x128xf32> to vector<8x32xf32>
    %383 = arith.negf %382 : vector<8x32xf32>
    %384 = math.exp %383 : vector<8x32xf32>
    %cst_101 = arith.constant 1.000000e+00 : f32
    %385 = vector.broadcast %cst_101 : f32 to vector<8x32xf32>
    %386 = arith.addf %385, %384 : vector<8x32xf32>
    %387 = arith.divf %385, %386 : vector<8x32xf32>
    %388 = vector.extract_strided_slice %375 {offsets = [0, 64], sizes = [8, 32], strides = [1, 1]} : vector<8x128xf32> to vector<8x32xf32>
    %389 = math.tanh %388 : vector<8x32xf32>
    %390 = vector.extract_strided_slice %375 {offsets = [0, 96], sizes = [8, 32], strides = [1, 1]} : vector<8x128xf32> to vector<8x32xf32>
    %391 = arith.negf %390 : vector<8x32xf32>
    %392 = math.exp %391 : vector<8x32xf32>
    %cst_102 = arith.constant 1.000000e+00 : f32
    %393 = vector.broadcast %cst_102 : f32 to vector<8x32xf32>
    %394 = arith.addf %393, %392 : vector<8x32xf32>
    %395 = arith.divf %393, %394 : vector<8x32xf32>
    %396 = arith.mulf %387, %369 : vector<8x32xf32>
    %397 = arith.mulf %381, %389 : vector<8x32xf32>
    %398 = arith.addf %396, %397 : vector<8x32xf32>
    %399 = math.tanh %398 : vector<8x32xf32>
    %400 = arith.mulf %395, %399 : vector<8x32xf32>
    %401 = vector.extract_strided_slice %253 {offsets = [40, 0], sizes = [8, 128], strides = [1, 1]} : vector<64x128xf32> to vector<8x128xf32>
    %c0_103 = arith.constant 0 : index
    %c0_104 = arith.constant 0 : index
    %402 = vector.load %arg5[%c0_103, %c0_104] : memref<32x128xf32, #tpu.memory_space<vmem>>, vector<32x128xf32>
    %cst_105 = arith.constant dense<0.000000e+00> : vector<8x128xf32>
    %403 = tpu.matmul %400, %402, %cst_105 {dimension_numbers = #tpu.dot_dimension_numbers<[1], [0], [0], [1], [0, 0, 1, 1], [], []>} : vector<8x32xf32>, vector<32x128xf32>, vector<8x128xf32> -> vector<8x128xf32>
    %404 = arith.addf %401, %403 : vector<8x128xf32>
    %405 = vector.extract_strided_slice %404 {offsets = [0, 0], sizes = [8, 32], strides = [1, 1]} : vector<8x128xf32> to vector<8x32xf32>
    %406 = arith.negf %405 : vector<8x32xf32>
    %407 = math.exp %406 : vector<8x32xf32>
    %cst_106 = arith.constant 1.000000e+00 : f32
    %408 = vector.broadcast %cst_106 : f32 to vector<8x32xf32>
    %409 = arith.addf %408, %407 : vector<8x32xf32>
    %410 = arith.divf %408, %409 : vector<8x32xf32>
    %411 = vector.extract_strided_slice %404 {offsets = [0, 32], sizes = [8, 32], strides = [1, 1]} : vector<8x128xf32> to vector<8x32xf32>
    %412 = arith.negf %411 : vector<8x32xf32>
    %413 = math.exp %412 : vector<8x32xf32>
    %cst_107 = arith.constant 1.000000e+00 : f32
    %414 = vector.broadcast %cst_107 : f32 to vector<8x32xf32>
    %415 = arith.addf %414, %413 : vector<8x32xf32>
    %416 = arith.divf %414, %415 : vector<8x32xf32>
    %417 = vector.extract_strided_slice %404 {offsets = [0, 64], sizes = [8, 32], strides = [1, 1]} : vector<8x128xf32> to vector<8x32xf32>
    %418 = math.tanh %417 : vector<8x32xf32>
    %419 = vector.extract_strided_slice %404 {offsets = [0, 96], sizes = [8, 32], strides = [1, 1]} : vector<8x128xf32> to vector<8x32xf32>
    %420 = arith.negf %419 : vector<8x32xf32>
    %421 = math.exp %420 : vector<8x32xf32>
    %cst_108 = arith.constant 1.000000e+00 : f32
    %422 = vector.broadcast %cst_108 : f32 to vector<8x32xf32>
    %423 = arith.addf %422, %421 : vector<8x32xf32>
    %424 = arith.divf %422, %423 : vector<8x32xf32>
    %425 = arith.mulf %416, %398 : vector<8x32xf32>
    %426 = arith.mulf %410, %418 : vector<8x32xf32>
    %427 = arith.addf %425, %426 : vector<8x32xf32>
    %428 = math.tanh %427 : vector<8x32xf32>
    %429 = arith.mulf %424, %428 : vector<8x32xf32>
    %430 = vector.extract_strided_slice %253 {offsets = [48, 0], sizes = [8, 128], strides = [1, 1]} : vector<64x128xf32> to vector<8x128xf32>
    %c0_109 = arith.constant 0 : index
    %c0_110 = arith.constant 0 : index
    %431 = vector.load %arg5[%c0_109, %c0_110] : memref<32x128xf32, #tpu.memory_space<vmem>>, vector<32x128xf32>
    %cst_111 = arith.constant dense<0.000000e+00> : vector<8x128xf32>
    %432 = tpu.matmul %429, %431, %cst_111 {dimension_numbers = #tpu.dot_dimension_numbers<[1], [0], [0], [1], [0, 0, 1, 1], [], []>} : vector<8x32xf32>, vector<32x128xf32>, vector<8x128xf32> -> vector<8x128xf32>
    %433 = arith.addf %430, %432 : vector<8x128xf32>
    %434 = vector.extract_strided_slice %433 {offsets = [0, 0], sizes = [8, 32], strides = [1, 1]} : vector<8x128xf32> to vector<8x32xf32>
    %435 = arith.negf %434 : vector<8x32xf32>
    %436 = math.exp %435 : vector<8x32xf32>
    %cst_112 = arith.constant 1.000000e+00 : f32
    %437 = vector.broadcast %cst_112 : f32 to vector<8x32xf32>
    %438 = arith.addf %437, %436 : vector<8x32xf32>
    %439 = arith.divf %437, %438 : vector<8x32xf32>
    %440 = vector.extract_strided_slice %433 {offsets = [0, 32], sizes = [8, 32], strides = [1, 1]} : vector<8x128xf32> to vector<8x32xf32>
    %441 = arith.negf %440 : vector<8x32xf32>
    %442 = math.exp %441 : vector<8x32xf32>
    %cst_113 = arith.constant 1.000000e+00 : f32
    %443 = vector.broadcast %cst_113 : f32 to vector<8x32xf32>
    %444 = arith.addf %443, %442 : vector<8x32xf32>
    %445 = arith.divf %443, %444 : vector<8x32xf32>
    %446 = vector.extract_strided_slice %433 {offsets = [0, 64], sizes = [8, 32], strides = [1, 1]} : vector<8x128xf32> to vector<8x32xf32>
    %447 = math.tanh %446 : vector<8x32xf32>
    %448 = vector.extract_strided_slice %433 {offsets = [0, 96], sizes = [8, 32], strides = [1, 1]} : vector<8x128xf32> to vector<8x32xf32>
    %449 = arith.negf %448 : vector<8x32xf32>
    %450 = math.exp %449 : vector<8x32xf32>
    %cst_114 = arith.constant 1.000000e+00 : f32
    %451 = vector.broadcast %cst_114 : f32 to vector<8x32xf32>
    %452 = arith.addf %451, %450 : vector<8x32xf32>
    %453 = arith.divf %451, %452 : vector<8x32xf32>
    %454 = arith.mulf %445, %427 : vector<8x32xf32>
    %455 = arith.mulf %439, %447 : vector<8x32xf32>
    %456 = arith.addf %454, %455 : vector<8x32xf32>
    %457 = math.tanh %456 : vector<8x32xf32>
    %458 = arith.mulf %453, %457 : vector<8x32xf32>
    %459 = vector.extract_strided_slice %253 {offsets = [56, 0], sizes = [8, 128], strides = [1, 1]} : vector<64x128xf32> to vector<8x128xf32>
    %c0_115 = arith.constant 0 : index
    %c0_116 = arith.constant 0 : index
    %460 = vector.load %arg5[%c0_115, %c0_116] : memref<32x128xf32, #tpu.memory_space<vmem>>, vector<32x128xf32>
    %cst_117 = arith.constant dense<0.000000e+00> : vector<8x128xf32>
    %461 = tpu.matmul %458, %460, %cst_117 {dimension_numbers = #tpu.dot_dimension_numbers<[1], [0], [0], [1], [0, 0, 1, 1], [], []>} : vector<8x32xf32>, vector<32x128xf32>, vector<8x128xf32> -> vector<8x128xf32>
    %462 = arith.addf %459, %461 : vector<8x128xf32>
    %463 = vector.extract_strided_slice %462 {offsets = [0, 0], sizes = [8, 32], strides = [1, 1]} : vector<8x128xf32> to vector<8x32xf32>
    %464 = arith.negf %463 : vector<8x32xf32>
    %465 = math.exp %464 : vector<8x32xf32>
    %cst_118 = arith.constant 1.000000e+00 : f32
    %466 = vector.broadcast %cst_118 : f32 to vector<8x32xf32>
    %467 = arith.addf %466, %465 : vector<8x32xf32>
    %468 = arith.divf %466, %467 : vector<8x32xf32>
    %469 = vector.extract_strided_slice %462 {offsets = [0, 32], sizes = [8, 32], strides = [1, 1]} : vector<8x128xf32> to vector<8x32xf32>
    %470 = arith.negf %469 : vector<8x32xf32>
    %471 = math.exp %470 : vector<8x32xf32>
    %cst_119 = arith.constant 1.000000e+00 : f32
    %472 = vector.broadcast %cst_119 : f32 to vector<8x32xf32>
    %473 = arith.addf %472, %471 : vector<8x32xf32>
    %474 = arith.divf %472, %473 : vector<8x32xf32>
    %475 = vector.extract_strided_slice %462 {offsets = [0, 64], sizes = [8, 32], strides = [1, 1]} : vector<8x128xf32> to vector<8x32xf32>
    %476 = math.tanh %475 : vector<8x32xf32>
    %477 = vector.extract_strided_slice %462 {offsets = [0, 96], sizes = [8, 32], strides = [1, 1]} : vector<8x128xf32> to vector<8x32xf32>
    %478 = arith.negf %477 : vector<8x32xf32>
    %479 = math.exp %478 : vector<8x32xf32>
    %cst_120 = arith.constant 1.000000e+00 : f32
    %480 = vector.broadcast %cst_120 : f32 to vector<8x32xf32>
    %481 = arith.addf %480, %479 : vector<8x32xf32>
    %482 = arith.divf %480, %481 : vector<8x32xf32>
    %483 = arith.mulf %474, %456 : vector<8x32xf32>
    %484 = arith.mulf %468, %476 : vector<8x32xf32>
    %485 = arith.addf %483, %484 : vector<8x32xf32>
    %486 = math.tanh %485 : vector<8x32xf32>
    %487 = arith.mulf %482, %486 : vector<8x32xf32>
    %c0_121 = arith.constant 0 : index
    %c0_122 = arith.constant 0 : index
    %488 = vector.load %arg7[%c0_121, %c0_122] : memref<32x10xf32, #tpu.memory_space<vmem>>, vector<32x10xf32>
    %cst_123 = arith.constant dense<0.000000e+00> : vector<8x10xf32>
    %489 = tpu.matmul %487, %488, %cst_123 {dimension_numbers = #tpu.dot_dimension_numbers<[1], [0], [0], [1], [0, 0, 1, 1], [], []>} : vector<8x32xf32>, vector<32x10xf32>, vector<8x10xf32> -> vector<8x10xf32>
    %c0_124 = arith.constant 0 : index
    %c0_125 = arith.constant 0 : index
    %490 = vector.load %arg8[%c0_124, %c0_125] : memref<1x10xf32, #tpu.memory_space<vmem>>, vector<1x10xf32>
    %491 = vector.broadcast %490 : vector<1x10xf32> to vector<8x10xf32>
    %492 = arith.addf %489, %491 : vector<8x10xf32>
    %c0_126 = arith.constant 0 : index
    %c0_127 = arith.constant 0 : index
    %493 = vector.load %arg9[%c0_126, %c0_127] : memref<8x10xf32, #tpu.memory_space<vmem>>, vector<8x10xf32>
    tpu.vector_store %arg9[%c0_126, %c0_127], %492 {strides = array<i32>} : memref<8x10xf32, #tpu.memory_space<vmem>>, vector<8x10xf32>,
    return
  }
}

</mosaic_0001>

<llo_original>
// kernel: lstm_model_forward.1
$region0: #{lstm_model_forward.1}
  #allocation0 [shape = 'u32[]', space=smem, size = 0x4, offset = 0x4, fixed_abs, tag = 'smem constant byte address 0x4 - core index']
  #allocation1 [shape = 'u32[144,128]{1,0:T(1,128)}', space=vmem, size = 0x12000, scoped, tag = 'internal scratch']
  #allocation2 [shape = 'f32[64,32]{1,0:T(8,128)}', space=vmem, size = 0x8000, scoped, tag = 'scratch operand']
  %s0 = inlined_call_operand.vmem [shape: f32[64,16], index: 0, kind: input, shape index: {}]
  %s1 = inlined_call_operand.vmem [shape: f32[16,128], index: 1, kind: input, shape index: {}]
  %s2 = inlined_call_operand.vmem [shape: f32[32,128], index: 2, kind: input, shape index: {}]
  %s3 = inlined_call_operand.vmem [shape: f32[1,128], index: 3, kind: input, shape index: {}]
  %s4 = inlined_call_operand.vmem [shape: f32[32,128], index: 4, kind: input, shape index: {}]
  %s5 = inlined_call_operand.vmem [shape: f32[32,128], index: 5, kind: input, shape index: {}]
  %s6 = inlined_call_operand.vmem [shape: f32[1,128], index: 6, kind: input, shape index: {}]
  %s7 = inlined_call_operand.vmem [shape: f32[32,10], index: 7, kind: input, shape index: {}]
  %s8 = inlined_call_operand.vmem [shape: f32[1,10], index: 8, kind: input, shape index: {}]
  %s9 = inlined_call_operand.vmem [shape: f32[8,10], index: 9, kind: output, shape index: {}]
  %s10 = sld [smem:[#allocation0]]
  $region46: #{lstm_model_forward.1} parent=0
    _
  %s12 = ssub.s32 1, %s10
  %s13 = scalar_select 0, %s12, %s10
  // Predicated region
  $region2: #{lstm_model_forward.1} parent=0 // pred_check
    _
  $region3: #{lstm_model_forward.1} parent=0 // pred_check_branch
    %15 = sbr.rel (0) target = $region5
  $region4: #{lstm_model_forward.1} parent=0 // pred_region
    _
  $region5: #{lstm_model_forward.1} parent=0 // pred_fallthru
    _
  // Predicated region
  $region6: #{lstm_model_forward.1} parent=0 // pred_check
    _
  $region7: #{lstm_model_forward.1} parent=0 // pred_check_branch
    %17 = sbr.rel (0) target = $region9
  $region8: #{lstm_model_forward.1} parent=0 // pred_region
    _
  $region9: #{lstm_model_forward.1} parent=0 // pred_fallthru
    _
  // Predicated region
  $region10: #{lstm_model_forward.1} parent=0 // pred_check
    _
  $region11: #{lstm_model_forward.1} parent=0 // pred_check_branch
    %19 = sbr.rel (0) target = $region13
  $region12: #{lstm_model_forward.1} parent=0 // pred_region
    _
  $region13: #{lstm_model_forward.1} parent=0 // pred_fallthru
    _
  // Predicated region
  $region14: #{lstm_model_forward.1} parent=0 // pred_check
    _
  $region15: #{lstm_model_forward.1} parent=0 // pred_check_branch
    %21 = sbr.rel (0) target = $region17
  $region16: #{lstm_model_forward.1} parent=0 // pred_region
    _
  $region17: #{lstm_model_forward.1} parent=0 // pred_fallthru
    _
  // Predicated region
  $region18: #{lstm_model_forward.1} parent=0 // pred_check
    _
  $region19: #{lstm_model_forward.1} parent=0 // pred_check_branch
    %23 = sbr.rel (0) target = $region21
  $region20: #{lstm_model_forward.1} parent=0 // pred_region
    _
  $region21: #{lstm_model_forward.1} parent=0 // pred_fallthru
    _
  // Predicated region
  $region22: #{lstm_model_forward.1} parent=0 // pred_check
    _
  $region23: #{lstm_model_forward.1} parent=0 // pred_check_branch
    %25 = sbr.rel (0) target = $region25
  $region24: #{lstm_model_forward.1} parent=0 // pred_region
    _
  $region25: #{lstm_model_forward.1} parent=0 // pred_fallthru
    _
  // Predicated region
  $region26: #{lstm_model_forward.1} parent=0 // pred_check
    _
  $region27: #{lstm_model_forward.1} parent=0 // pred_check_branch
    %27 = sbr.rel (0) target = $region29
  $region28: #{lstm_model_forward.1} parent=0 // pred_region
    _
  $region29: #{lstm_model_forward.1} parent=0 // pred_fallthru
    _
  // Predicated region
  $region30: #{lstm_model_forward.1} parent=0 // pred_check
    _
  $region31: #{lstm_model_forward.1} parent=0 // pred_check_branch
    %29 = sbr.rel (0) target = $region33
  $region32: #{lstm_model_forward.1} parent=0 // pred_region
    _
  $region33: #{lstm_model_forward.1} parent=0 // pred_fallthru
    _
  // Predicated region
  $region34: #{lstm_model_forward.1} parent=0 // pred_check
    _
  $region35: #{lstm_model_forward.1} parent=0 // pred_check_branch
    %31 = sbr.rel (0) target = $region37
  $region36: #{lstm_model_forward.1} parent=0 // pred_region
    _
  $region37: #{lstm_model_forward.1} parent=0 // pred_fallthru
    _
  %v32 = vld [vmem:[%s0] sm:$0xff]
  %v33 = vld [vmem:[%s0 + $0x8] sm:$0xff]
  %v34 = vld [vmem:[%s0 + $0x10] sm:$0xff]
  %v35 = vld [vmem:[%s0 + $0x18] sm:$0xff]
  %v36 = vld [vmem:[%s0 + $0x20] sm:$0xff]
  %v37 = vld [vmem:[%s0 + $0x28] sm:$0xff]
  %v38 = vld [vmem:[%s0 + $0x30] sm:$0xff]
  %v39 = vld [vmem:[%s0 + $0x38] sm:$0xff]
  %v40 = vld [vmem:[%s1] sm:$0xff]
  %v41 = vld [vmem:[%s1 + $0x8] sm:$0xff]
  %v42 = vld [vmem:[%s3] sm:$0x1]
  %v44 = vlaneseq
  %v45 = vshrl.u32 %v44, 7
  %v46 = vsub.s32 0, %v45
  %v47 = vrot.slane %v42, %v46
  %vm49 = vcmask 130048
  %v51 = vsel %vm49, %v32, 0
  %v54 = vsel %vm49, %v33, 0
  %v57 = vsel %vm49, %v34, 0
  %v60 = vsel %vm49, %v35, 0
  %v63 = vsel %vm49, %v36, 0
  %v66 = vsel %vm49, %v37, 0
  %v69 = vsel %vm49, %v38, 0
  %v72 = vsel %vm49, %v39, 0
  %74 = vmatprep.subr.mxu0 0.0
  %75 = vmatpush1.msra.mxu0 0.0
  %76 = vmatprep.subr.mxu0 0.0
  %77 = vmatpush1.msra.mxu0 0.0
  %78 = vmatprep.subr.mxu0 0.0
  %79 = vmatpush1.msra.mxu0 0.0
  %80 = vmatprep.subr.mxu0 0.0
  %81 = vmatpush1.msra.mxu0 0.0
  %82 = vmatprep.subr.mxu0 0.0
  %83 = vmatpush1.msra.mxu0 0.0
  %84 = vmatprep.subr.mxu0 0.0
  %85 = vmatpush1.msra.mxu0 0.0
  %86 = vmatprep.subr.mxu0 0.0
  %87 = vmatpush1.msra.mxu0 0.0
  %88 = vmatprep.subr.mxu0 0.0
  %89 = vmatpush1.msra.mxu0 0.0
  %90 = vmatprep.subr.mxu0 0.0
  %91 = vmatpush1.msra.mxu0 0.0
  %92 = vmatprep.subr.mxu0 0.0
  %93 = vmatpush1.msra.mxu0 0.0
  %94 = vmatprep.subr.mxu0 0.0
  %95 = vmatpush1.msra.mxu0 0.0
  %96 = vmatprep.subr.mxu0 0.0
  %97 = vmatpush1.msra.mxu0 0.0
  %98 = vmatprep.subr.mxu0 0.0
  %99 = vmatpush1.msra.mxu0 0.0
  %100 = vmatprep.subr.mxu0 0.0
  %101 = vmatpush1.msra.mxu0 0.0
  %102 = vmatprep.subr.mxu0 0.0
  %103 = vmatpush1.msra.mxu0 %v41
  %104 = vmatprep.subr.mxu0 0.0
  %105 = vmatpush1.msra.mxu0 %v40
  %106 = vmatprep.subr.mxu0 0.0
  %107 = vmatpush2.msra.mxu0 0.0
  %108 = vmatprep.subr.mxu0 0.0
  %109 = vmatpush2.msra.mxu0 0.0
  %110 = vmatprep.subr.mxu0 0.0
  %111 = vmatpush2.msra.mxu0 0.0
  %112 = vmatprep.subr.mxu0 0.0
  %113 = vmatpush2.msra.mxu0 0.0
  %114 = vmatprep.subr.mxu0 0.0
  %115 = vmatpush2.msra.mxu0 0.0
  %116 = vmatprep.subr.mxu0 0.0
  %117 = vmatpush2.msra.mxu0 0.0
  %118 = vmatprep.subr.mxu0 0.0
  %119 = vmatpush2.msra.mxu0 0.0
  %120 = vmatprep.subr.mxu0 0.0
  %121 = vmatpush2.msra.mxu0 0.0
  %122 = vmatprep.subr.mxu0 0.0
  %123 = vmatpush2.msra.mxu0 0.0
  %124 = vmatprep.subr.mxu0 0.0
  %125 = vmatpush2.msra.mxu0 0.0
  %126 = vmatprep.subr.mxu0 0.0
  %127 = vmatpush2.msra.mxu0 0.0
  %128 = vmatprep.subr.mxu0 0.0
  %129 = vmatpush2.msra.mxu0 0.0
  %130 = vmatprep.subr.mxu0 0.0
  %131 = vmatpush2.msra.mxu0 0.0
  %132 = vmatprep.subr.mxu0 0.0
  %133 = vmatpush2.msra.mxu0 0.0
  %134 = vmatprep.subr.mxu0 0.0
  %135 = vmatpush2.msra.mxu0 0.0
  %136 = vmatprep.subr.mxu0 0.0
  %137 = vmatpush2.msra.mxu0 0.0
  %138 = vmatprep.mubr.f32.mxu0 0.0
  %139 = vmatmul.mubr.f32.gmra.mxu0 %v51
  %v140 = vpop.f32.mrf.mxu0
  %v141 = vadd.f32 %v47, %v140
  %v142 = vpop.f32.mrf.mxu0
  %143 = vmatprep.mubr.f32.mxu0 0.0
  %144 = vmatmul.mubr.f32.gmra.mxu0 %v54
  %v145 = vpop.f32.mrf.mxu0
  %v146 = vadd.f32 %v47, %v145
  %v147 = vpop.f32.mrf.mxu0
  %148 = vmatprep.mubr.f32.mxu0 0.0
  %149 = vmatmul.mubr.f32.gmra.mxu0 %v57
  %v150 = vpop.f32.mrf.mxu0
  %v151 = vadd.f32 %v47, %v150
  %v152 = vpop.f32.mrf.mxu0
  %153 = vmatprep.mubr.f32.mxu0 0.0
  %154 = vmatmul.mubr.f32.gmra.mxu0 %v60
  %v155 = vpop.f32.mrf.mxu0
  %v156 = vadd.f32 %v47, %v155
  %v157 = vpop.f32.mrf.mxu0
  %158 = vmatprep.mubr.f32.mxu0 0.0
  %159 = vmatmul.mubr.f32.gmra.mxu0 %v63
  %v160 = vpop.f32.mrf.mxu0
  %v161 = vadd.f32 %v47, %v160
  %v162 = vpop.f32.mrf.mxu0
  %163 = vmatprep.mubr.f32.mxu0 0.0
  %164 = vmatmul.mubr.f32.gmra.mxu0 %v66
  %v165 = vpop.f32.mrf.mxu0
  %v166 = vadd.f32 %v47, %v165
  %v167 = vpop.f32.mrf.mxu0
  %168 = vmatprep.mubr.f32.mxu0 0.0
  %169 = vmatmul.mubr.f32.gmra.mxu0 %v69
  %v170 = vpop.f32.mrf.mxu0
  %v171 = vadd.f32 %v47, %v170
  %v172 = vpop.f32.mrf.mxu0
  %173 = vmatprep.mubr.f32.mxu0 0.0
  %174 = vmatmul.mubr.f32.gmra.mxu0 %v72
  %v175 = vpop.f32.mrf.mxu0
  %v176 = vadd.f32 %v47, %v175
  %v177 = vpop.f32.mrf.mxu0
  %178 = vdwg.mxu0
  %v179 = vld [vmem:[%s2] sm:$0xff]
  %v180 = vld [vmem:[%s2 + $0x8] sm:$0xff]
  %v181 = vld [vmem:[%s2 + $0x10] sm:$0xff]
  %v182 = vld [vmem:[%s2 + $0x18] sm:$0xff]
  %vm183 = vcmask 261120
  %v185 = vsel %vm183, 0.0, 0
  %187 = vmatprep.subr.mxu0 0.0
  %188 = vmatpush1.msra.mxu0 0.0
  %189 = vmatprep.subr.mxu0 0.0
  %190 = vmatpush1.msra.mxu0 0.0
  %191 = vmatprep.subr.mxu0 0.0
  %192 = vmatpush1.msra.mxu0 0.0
  %193 = vmatprep.subr.mxu0 0.0
  %194 = vmatpush1.msra.mxu0 0.0
  %195 = vmatprep.subr.mxu0 0.0
  %196 = vmatpush1.msra.mxu0 0.0
  %197 = vmatprep.subr.mxu0 0.0
  %198 = vmatpush1.msra.mxu0 0.0
  %199 = vmatprep.subr.mxu0 0.0
  %200 = vmatpush1.msra.mxu0 0.0
  %201 = vmatprep.subr.mxu0 0.0
  %202 = vmatpush1.msra.mxu0 0.0
  %203 = vmatprep.subr.mxu0 0.0
  %204 = vmatpush1.msra.mxu0 0.0
  %205 = vmatprep.subr.mxu0 0.0
  %206 = vmatpush1.msra.mxu0 0.0
  %207 = vmatprep.subr.mxu0 0.0
  %208 = vmatpush1.msra.mxu0 0.0
  %209 = vmatprep.subr.mxu0 0.0
  %210 = vmatpush1.msra.mxu0 0.0
  %211 = vmatprep.subr.mxu0 0.0
  %212 = vmatpush1.msra.mxu0 %v182
  %213 = vmatprep.subr.mxu0 0.0
  %214 = vmatpush1.msra.mxu0 %v181
  %215 = vmatprep.subr.mxu0 0.0
  %216 = vmatpush1.msra.mxu0 %v180
  %217 = vmatprep.subr.mxu0 0.0
  %218 = vmatpush1.msra.mxu0 %v179
  %219 = vmatprep.subr.mxu0 0.0
  %220 = vmatpush2.msra.mxu0 0.0
  %221 = vmatprep.subr.mxu0 0.0
  %222 = vmatpush2.msra.mxu0 0.0
  %223 = vmatprep.subr.mxu0 0.0
  %224 = vmatpush2.msra.mxu0 0.0
  %225 = vmatprep.subr.mxu0 0.0
  %226 = vmatpush2.msra.mxu0 0.0
  %227 = vmatprep.subr.mxu0 0.0
  %228 = vmatpush2.msra.mxu0 0.0
  %229 = vmatprep.subr.mxu0 0.0
  %230 = vmatpush2.msra.mxu0 0.0
  %231 = vmatprep.subr.mxu0 0.0
  %232 = vmatpush2.msra.mxu0 0.0
  %233 = vmatprep.subr.mxu0 0.0
  %234 = vmatpush2.msra.mxu0 0.0
  %235 = vmatprep.subr.mxu0 0.0
  %236 = vmatpush2.msra.mxu0 0.0
  %237 = vmatprep.subr.mxu0 0.0
  %238 = vmatpush2.msra.mxu0 0.0
  %239 = vmatprep.subr.mxu0 0.0
  %240 = vmatpush2.msra.mxu0 0.0
  %241 = vmatprep.subr.mxu0 0.0
  %242 = vmatpush2.msra.mxu0 0.0
  %243 = vmatprep.subr.mxu0 0.0
  %244 = vmatpush2.msra.mxu0 0.0
  %245 = vmatprep.subr.mxu0 0.0
  %246 = vmatpush2.msra.mxu0 0.0
  %247 = vmatprep.subr.mxu0 0.0
  %248 = vmatpush2.msra.mxu0 0.0
  %249 = vmatprep.subr.mxu0 0.0
  %250 = vmatpush2.msra.mxu0 0.0
  %251 = vmatprep.mubr.f32.mxu0 0.0
  %252 = vmatmul.mubr.f32.gmra.mxu0 %v185
  %v253 = vpop.f32.mrf.mxu0
  %v254 = vadd.f32 0.0, %v253
  %v255 = vpop.f32.mrf.mxu0
  %256 = vdwg.mxu0
  %v257 = vadd.f32 %v141, %v254
  %v258 = vxor.u32 %v257, 2147483648
  %v259 = vmul.f32 %v258, 1.442695
  %v260 = vpow.pop %v259
  %v261 = vadd.f32 %v260, 1.0
  %v262 = vrcp.pop %v261
  %v263 = vmul.f32 1.0, %v262
  %v264 = vtanh.pop %v257
  %v265 = vmul.f32 %v263, 0.0
  %267 = vrot.lane.b32.xlu0 %v264, 64
  %v268 = vpop.permute.xlu0 %267
  %v270 = vmul.f32 %v263, %v268
  %272 = vrot.lane.b32.xlu0 %v270, 32
  %v273 = vpop.permute.xlu0 %272
  %v275 = vadd.f32 %v265, %v273
  %v276 = vtanh.pop %v275
  %278 = vrot.lane.b32.xlu0 %v276, 64
  %v279 = vpop.permute.xlu0 %278
  %v281 = vmul.f32 %v263, %v279
  %283 = vrot.lane.b32.xlu0 %v281, 32
  %v284 = vpop.permute.xlu0 %283
  %286 = vst.msk [vmem:[#allocation2] sm:$0xff] %vm183, %v284
  %v287 = vld [vmem:[%s2] sm:$0xff]
  %v288 = vld [vmem:[%s2 + $0x8] sm:$0xff]
  %v289 = vld [vmem:[%s2 + $0x10] sm:$0xff]
  %v290 = vld [vmem:[%s2 + $0x18] sm:$0xff]
  %v291 = vsel %vm183, %v284, 0
  %293 = vmatprep.subr.mxu0 0.0
  %294 = vmatpush1.msra.mxu0 0.0
  %295 = vmatprep.subr.mxu0 0.0
  %296 = vmatpush1.msra.mxu0 0.0
  %297 = vmatprep.subr.mxu0 0.0
  %298 = vmatpush1.msra.mxu0 0.0
  %299 = vmatprep.subr.mxu0 0.0
  %300 = vmatpush1.msra.mxu0 0.0
  %301 = vmatprep.subr.mxu0 0.0
  %302 = vmatpush1.msra.mxu0 0.0
  %303 = vmatprep.subr.mxu0 0.0
  %304 = vmatpush1.msra.mxu0 0.0
  %305 = vmatprep.subr.mxu0 0.0
  %306 = vmatpush1.msra.mxu0 0.0
  %307 = vmatprep.subr.mxu0 0.0
  %308 = vmatpush1.msra.mxu0 0.0
  %309 = vmatprep.subr.mxu0 0.0
  %310 = vmatpush1.msra.mxu0 0.0
  %311 = vmatprep.subr.mxu0 0.0
  %312 = vmatpush1.msra.mxu0 0.0
  %313 = vmatprep.subr.mxu0 0.0
  %314 = vmatpush1.msra.mxu0 0.0
  %315 = vmatprep.subr.mxu0 0.0
  %316 = vmatpush1.msra.mxu0 0.0
  %317 = vmatprep.subr.mxu0 0.0
  %318 = vmatpush1.msra.mxu0 %v290
  %319 = vmatprep.subr.mxu0 0.0
  %320 = vmatpush1.msra.mxu0 %v289
  %321 = vmatprep.subr.mxu0 0.0
  %322 = vmatpush1.msra.mxu0 %v288
  %323 = vmatprep.subr.mxu0 0.0
  %324 = vmatpush1.msra.mxu0 %v287
  %325 = vmatprep.subr.mxu0 0.0
  %326 = vmatpush2.msra.mxu0 0.0
  %327 = vmatprep.subr.mxu0 0.0
  %328 = vmatpush2.msra.mxu0 0.0
  %329 = vmatprep.subr.mxu0 0.0
  %330 = vmatpush2.msra.mxu0 0.0
  %331 = vmatprep.subr.mxu0 0.0
  %332 = vmatpush2.msra.mxu0 0.0
  %333 = vmatprep.subr.mxu0 0.0
  %334 = vmatpush2.msra.mxu0 0.0
  %335 = vmatprep.subr.mxu0 0.0
  %336 = vmatpush2.msra.mxu0 0.0
  %337 = vmatprep.subr.mxu0 0.0
  %338 = vmatpush2.msra.mxu0 0.0
  %339 = vmatprep.subr.mxu0 0.0
  %340 = vmatpush2.msra.mxu0 0.0
  %341 = vmatprep.subr.mxu0 0.0
  %342 = vmatpush2.msra.mxu0 0.0
  %343 = vmatprep.subr.mxu0 0.0
  %344 = vmatpush2.msra.mxu0 0.0
  %345 = vmatprep.subr.mxu0 0.0
  %346 = vmatpush2.msra.mxu0 0.0
  %347 = vmatprep.subr.mxu0 0.0
  %348 = vmatpush2.msra.mxu0 0.0
  %349 = vmatprep.subr.mxu0 0.0
  %350 = vmatpush2.msra.mxu0 0.0
  %351 = vmatprep.subr.mxu0 0.0
  %352 = vmatpush2.msra.mxu0 0.0
  %353 = vmatprep.subr.mxu0 0.0
  %354 = vmatpush2.msra.mxu0 0.0
  %355 = vmatprep.subr.mxu0 0.0
  %356 = vmatpush2.msra.mxu0 0.0
  %357 = vmatprep.mubr.f32.mxu0 0.0
  %358 = vmatmul.mubr.f32.gmra.mxu0 %v291
  %v359 = vpop.f32.mrf.mxu0
  %v360 = vadd.f32 0.0, %v359
  %v361 = vpop.f32.mrf.mxu0
  %362 = vdwg.mxu0
  %v363 = vadd.f32 %v146, %v360
  %v364 = vxor.u32 %v363, 2147483648
  %v365 = vmul.f32 %v364, 1.442695
  %v366 = vpow.pop %v365
  %v367 = vadd.f32 %v366, 1.0
  %v368 = vrcp.pop %v367
  %v369 = vmul.f32 1.0, %v368
  %v370 = vtanh.pop %v363
  %v371 = vmul.f32 %v369, %v275
  %373 = vrot.lane.b32.xlu0 %v370, 64
  %v374 = vpop.permute.xlu0 %373
  %v376 = vmul.f32 %v369, %v374
  %378 = vrot.lane.b32.xlu0 %v376, 32
  %v379 = vpop.permute.xlu0 %378
  %v381 = vadd.f32 %v371, %v379
  %v382 = vtanh.pop %v381
  %384 = vrot.lane.b32.xlu0 %v382, 64
  %v385 = vpop.permute.xlu0 %384
  %v387 = vmul.f32 %v369, %v385
  %389 = vrot.lane.b32.xlu0 %v387, 32
  %v390 = vpop.permute.xlu0 %389
  %392 = vst.msk [vmem:[#allocation2 + $0x8] sm:$0xff] %vm183, %v390
  %v393 = vld [vmem:[%s2] sm:$0xff]
  %v394 = vld [vmem:[%s2 + $0x8] sm:$0xff]
  %v395 = vld [vmem:[%s2 + $0x10] sm:$0xff]
  %v396 = vld [vmem:[%s2 + $0x18] sm:$0xff]
  %v397 = vsel %vm183, %v390, 0
  %399 = vmatprep.subr.mxu0 0.0
  %400 = vmatpush1.msra.mxu0 0.0
  %401 = vmatprep.subr.mxu0 0.0
  %402 = vmatpush1.msra.mxu0 0.0
  %403 = vmatprep.subr.mxu0 0.0
  %404 = vmatpush1.msra.mxu0 0.0
  %405 = vmatprep.subr.mxu0 0.0
  %406 = vmatpush1.msra.mxu0 0.0
  %407 = vmatprep.subr.mxu0 0.0
  %408 = vmatpush1.msra.mxu0 0.0
  %409 = vmatprep.subr.mxu0 0.0
  %410 = vmatpush1.msra.mxu0 0.0
  %411 = vmatprep.subr.mxu0 0.0
  %412 = vmatpush1.msra.mxu0 0.0
  %413 = vmatprep.subr.mxu0 0.0
  %414 = vmatpush1.msra.mxu0 0.0
  %415 = vmatprep.subr.mxu0 0.0
  %416 = vmatpush1.msra.mxu0 0.0
  %417 = vmatprep.subr.mxu0 0.0
  %418 = vmatpush1.msra.mxu0 0.0
  %419 = vmatprep.subr.mxu0 0.0
  %420 = vmatpush1.msra.mxu0 0.0
  %421 = vmatprep.subr.mxu0 0.0
  %422 = vmatpush1.msra.mxu0 0.0
  %423 = vmatprep.subr.mxu0 0.0
  %424 = vmatpush1.msra.mxu0 %v396
  %425 = vmatprep.subr.mxu0 0.0
  %426 = vmatpush1.msra.mxu0 %v395
  %427 = vmatprep.subr.mxu0 0.0
  %428 = vmatpush1.msra.mxu0 %v394
  %429 = vmatprep.subr.mxu0 0.0
  %430 = vmatpush1.msra.mxu0 %v393
  %431 = vmatprep.subr.mxu0 0.0
  %432 = vmatpush2.msra.mxu0 0.0
  %433 = vmatprep.subr.mxu0 0.0
  %434 = vmatpush2.msra.mxu0 0.0
  %435 = vmatprep.subr.mxu0 0.0
  %436 = vmatpush2.msra.mxu0 0.0
  %437 = vmatprep.subr.mxu0 0.0
  %438 = vmatpush2.msra.mxu0 0.0
  %439 = vmatprep.subr.mxu0 0.0
  %440 = vmatpush2.msra.mxu0 0.0
  %441 = vmatprep.subr.mxu0 0.0
  %442 = vmatpush2.msra.mxu0 0.0
  %443 = vmatprep.subr.mxu0 0.0
  %444 = vmatpush2.msra.mxu0 0.0
  %445 = vmatprep.subr.mxu0 0.0
  %446 = vmatpush2.msra.mxu0 0.0
  %447 = vmatprep.subr.mxu0 0.0
  %448 = vmatpush2.msra.mxu0 0.0
  %449 = vmatprep.subr.mxu0 0.0
  %450 = vmatpush2.msra.mxu0 0.0
  %451 = vmatprep.subr.mxu0 0.0
  %452 = vmatpush2.msra.mxu0 0.0
  %453 = vmatprep.subr.mxu0 0.0
  %454 = vmatpush2.msra.mxu0 0.0
  %455 = vmatprep.subr.mxu0 0.0
  %456 = vmatpush2.msra.mxu0 0.0
  %457 = vmatprep.subr.mxu0 0.0
  %458 = vmatpush2.msra.mxu0 0.0
  %459 = vmatprep.subr.mxu0 0.0
  %460 = vmatpush2.msra.mxu0 0.0
  %461 = vmatprep.subr.mxu0 0.0
  %462 = vmatpush2.msra.mxu0 0.0
  %463 = vmatprep.mubr.f32.mxu0 0.0
  %464 = vmatmul.mubr.f32.gmra.mxu0 %v397
  %v465 = vpop.f32.mrf.mxu0
  %v466 = vadd.f32 0.0, %v465
  %v467 = vpop.f32.mrf.mxu0
  %468 = vdwg.mxu0
  %v469 = vadd.f32 %v151, %v466
  %v470 = vxor.u32 %v469, 2147483648
  %v471 = vmul.f32 %v470, 1.442695
  %v472 = vpow.pop %v471
  %v473 = vadd.f32 %v472, 1.0
  %v474 = vrcp.pop %v473
  %v475 = vmul.f32 1.0, %v474
  %v476 = vtanh.pop %v469
  %v477 = vmul.f32 %v475, %v381
  %479 = vrot.lane.b32.xlu0 %v476, 64
  %v480 = vpop.permute.xlu0 %479
  %v482 = vmul.f32 %v475, %v480
  %484 = vrot.lane.b32.xlu0 %v482, 32
  %v485 = vpop.permute.xlu0 %484
  %v487 = vadd.f32 %v477, %v485
  %v488 = vtanh.pop %v487
  %490 = vrot.lane.b32.xlu0 %v488, 64
  %v491 = vpop.permute.xlu0 %490
  %v493 = vmul.f32 %v475, %v491
  %495 = vrot.lane.b32.xlu0 %v493, 32
  %v496 = vpop.permute.xlu0 %495
  %498 = vst.msk [vmem:[#allocation2 + $0x10] sm:$0xff] %vm183, %v496
  %v499 = vld [vmem:[%s2] sm:$0xff]
  %v500 = vld [vmem:[%s2 + $0x8] sm:$0xff]
  %v501 = vld [vmem:[%s2 + $0x10] sm:$0xff]
  %v502 = vld [vmem:[%s2 + $0x18] sm:$0xff]
  %v503 = vsel %vm183, %v496, 0
  %505 = vmatprep.subr.mxu0 0.0
  %506 = vmatpush1.msra.mxu0 0.0
  %507 = vmatprep.subr.mxu0 0.0
  %508 = vmatpush1.msra.mxu0 0.0
  %509 = vmatprep.subr.mxu0 0.0
  %510 = vmatpush1.msra.mxu0 0.0
  %511 = vmatprep.subr.mxu0 0.0
  %512 = vmatpush1.msra.mxu0 0.0
  %513 = vmatprep.subr.mxu0 0.0
  %514 = vmatpush1.msra.mxu0 0.0
  %515 = vmatprep.subr.mxu0 0.0
  %516 = vmatpush1.msra.mxu0 0.0
  %517 = vmatprep.subr.mxu0 0.0
  %518 = vmatpush1.msra.mxu0 0.0
  %519 = vmatprep.subr.mxu0 0.0
  %520 = vmatpush1.msra.mxu0 0.0
  %521 = vmatprep.subr.mxu0 0.0
  %522 = vmatpush1.msra.mxu0 0.0
  %523 = vmatprep.subr.mxu0 0.0
  %524 = vmatpush1.msra.mxu0 0.0
  %525 = vmatprep.subr.mxu0 0.0
  %526 = vmatpush1.msra.mxu0 0.0
  %527 = vmatprep.subr.mxu0 0.0
  %528 = vmatpush1.msra.mxu0 0.0
  %529 = vmatprep.subr.mxu0 0.0
  %530 = vmatpush1.msra.mxu0 %v502
  %531 = vmatprep.subr.mxu0 0.0
  %532 = vmatpush1.msra.mxu0 %v501
  %533 = vmatprep.subr.mxu0 0.0
  %534 = vmatpush1.msra.mxu0 %v500
  %535 = vmatprep.subr.mxu0 0.0
  %536 = vmatpush1.msra.mxu0 %v499
  %537 = vmatprep.subr.mxu0 0.0
  %538 = vmatpush2.msra.mxu0 0.0
  %539 = vmatprep.subr.mxu0 0.0
  %540 = vmatpush2.msra.mxu0 0.0
  %541 = vmatprep.subr.mxu0 0.0
  %542 = vmatpush2.msra.mxu0 0.0
  %543 = vmatprep.subr.mxu0 0.0
  %544 = vmatpush2.msra.mxu0 0.0
  %545 = vmatprep.subr.mxu0 0.0
  %546 = vmatpush2.msra.mxu0 0.0
  %547 = vmatprep.subr.mxu0 0.0
  %548 = vmatpush2.msra.mxu0 0.0
  %549 = vmatprep.subr.mxu0 0.0
  %550 = vmatpush2.msra.mxu0 0.0
  %551 = vmatprep.subr.mxu0 0.0
  %552 = vmatpush2.msra.mxu0 0.0
  %553 = vmatprep.subr.mxu0 0.0
  %554 = vmatpush2.msra.mxu0 0.0
  %555 = vmatprep.subr.mxu0 0.0
  %556 = vmatpush2.msra.mxu0 0.0
  %557 = vmatprep.subr.mxu0 0.0
  %558 = vmatpush2.msra.mxu0 0.0
  %559 = vmatprep.subr.mxu0 0.0
  %560 = vmatpush2.msra.mxu0 0.0
  %561 = vmatprep.subr.mxu0 0.0
  %562 = vmatpush2.msra.mxu0 0.0
  %563 = vmatprep.subr.mxu0 0.0
  %564 = vmatpush2.msra.mxu0 0.0
  %565 = vmatprep.subr.mxu0 0.0
  %566 = vmatpush2.msra.mxu0 0.0
  %567 = vmatprep.subr.mxu0 0.0
  %568 = vmatpush2.msra.mxu0 0.0
  %569 = vmatprep.mubr.f32.mxu0 0.0
  %570 = vmatmul.mubr.f32.gmra.mxu0 %v503
  %v571 = vpop.f32.mrf.mxu0
  %v572 = vadd.f32 0.0, %v571
  %v573 = vpop.f32.mrf.mxu0
  %574 = vdwg.mxu0
  %v575 = vadd.f32 %v156, %v572
  %v576 = vxor.u32 %v575, 2147483648
  %v577 = vmul.f32 %v576, 1.442695
  %v578 = vpow.pop %v577
  %v579 = vadd.f32 %v578, 1.0
  %v580 = vrcp.pop %v579
  %v581 = vmul.f32 1.0, %v580
  %v582 = vtanh.pop %v575
  %v583 = vmul.f32 %v581, %v487
  %585 = vrot.lane.b32.xlu0 %v582, 64
  %v586 = vpop.permute.xlu0 %585
  %v588 = vmul.f32 %v581, %v586
  %590 = vrot.lane.b32.xlu0 %v588, 32
  %v591 = vpop.permute.xlu0 %590
  %v593 = vadd.f32 %v583, %v591
  %v594 = vtanh.pop %v593
  %596 = vrot.lane.b32.xlu0 %v594, 64
  %v597 = vpop.permute.xlu0 %596
  %v599 = vmul.f32 %v581, %v597
  %601 = vrot.lane.b32.xlu0 %v599, 32
  %v602 = vpop.permute.xlu0 %601
  %604 = vst.msk [vmem:[#allocation2 + $0x18] sm:$0xff] %vm183, %v602
  %v605 = vld [vmem:[%s2] sm:$0xff]
  %v606 = vld [vmem:[%s2 + $0x8] sm:$0xff]
  %v607 = vld [vmem:[%s2 + $0x10] sm:$0xff]
  %v608 = vld [vmem:[%s2 + $0x18] sm:$0xff]
  %v609 = vsel %vm183, %v602, 0
  %611 = vmatprep.subr.mxu0 0.0
  %612 = vmatpush1.msra.mxu0 0.0
  %613 = vmatprep.subr.mxu0 0.0
  %614 = vmatpush1.msra.mxu0 0.0
  %615 = vmatprep.subr.mxu0 0.0
  %616 = vmatpush1.msra.mxu0 0.0
  %617 = vmatprep.subr.mxu0 0.0
  %618 = vmatpush1.msra.mxu0 0.0
  %619 = vmatprep.subr.mxu0 0.0
  %620 = vmatpush1.msra.mxu0 0.0
  %621 = vmatprep.subr.mxu0 0.0
  %622 = vmatpush1.msra.mxu0 0.0
  %623 = vmatprep.subr.mxu0 0.0
  %624 = vmatpush1.msra.mxu0 0.0
  %625 = vmatprep.subr.mxu0 0.0
  %626 = vmatpush1.msra.mxu0 0.0
  %627 = vmatprep.subr.mxu0 0.0
  %628 = vmatpush1.msra.mxu0 0.0
  %629 = vmatprep.subr.mxu0 0.0
  %630 = vmatpush1.msra.mxu0 0.0
  %631 = vmatprep.subr.mxu0 0.0
  %632 = vmatpush1.msra.mxu0 0.0
  %633 = vmatprep.subr.mxu0 0.0
  %634 = vmatpush1.msra.mxu0 0.0
  %635 = vmatprep.subr.mxu0 0.0
  %636 = vmatpush1.msra.mxu0 %v608
  %637 = vmatprep.subr.mxu0 0.0
  %638 = vmatpush1.msra.mxu0 %v607
  %639 = vmatprep.subr.mxu0 0.0
  %640 = vmatpush1.msra.mxu0 %v606
  %641 = vmatprep.subr.mxu0 0.0
  %642 = vmatpush1.msra.mxu0 %v605
  %643 = vmatprep.subr.mxu0 0.0
  %644 = vmatpush2.msra.mxu0 0.0
  %645 = vmatprep.subr.mxu0 0.0
  %646 = vmatpush2.msra.mxu0 0.0
  %647 = vmatprep.subr.mxu0 0.0
  %648 = vmatpush2.msra.mxu0 0.0
  %649 = vmatprep.subr.mxu0 0.0
  %650 = vmatpush2.msra.mxu0 0.0
  %651 = vmatprep.subr.mxu0 0.0
  %652 = vmatpush2.msra.mxu0 0.0
  %653 = vmatprep.subr.mxu0 0.0
  %654 = vmatpush2.msra.mxu0 0.0
  %655 = vmatprep.subr.mxu0 0.0
  %656 = vmatpush2.msra.mxu0 0.0
  %657 = vmatprep.subr.mxu0 0.0
  %658 = vmatpush2.msra.mxu0 0.0
  %659 = vmatprep.subr.mxu0 0.0
  %660 = vmatpush2.msra.mxu0 0.0
  %661 = vmatprep.subr.mxu0 0.0
  %662 = vmatpush2.msra.mxu0 0.0
  %663 = vmatprep.subr.mxu0 0.0
  %664 = vmatpush2.msra.mxu0 0.0
  %665 = vmatprep.subr.mxu0 0.0
  %666 = vmatpush2.msra.mxu0 0.0
  %667 = vmatprep.subr.mxu0 0.0
  %668 = vmatpush2.msra.mxu0 0.0
  %669 = vmatprep.subr.mxu0 0.0
  %670 = vmatpush2.msra.mxu0 0.0
  %671 = vmatprep.subr.mxu0 0.0
  %672 = vmatpush2.msra.mxu0 0.0
  %673 = vmatprep.subr.mxu0 0.0
  %674 = vmatpush2.msra.mxu0 0.0
  %675 = vmatprep.mubr.f32.mxu0 0.0
  %676 = vmatmul.mubr.f32.gmra.mxu0 %v609
  %v677 = vpop.f32.mrf.mxu0
  %v678 = vadd.f32 0.0, %v677
  %v679 = vpop.f32.mrf.mxu0
  %680 = vdwg.mxu0
  %v681 = vadd.f32 %v161, %v678
  %v682 = vxor.u32 %v681, 2147483648
  %v683 = vmul.f32 %v682, 1.442695
  %v684 = vpow.pop %v683
  %v685 = vadd.f32 %v684, 1.0
  %v686 = vrcp.pop %v685
  %v687 = vmul.f32 1.0, %v686
  %v688 = vtanh.pop %v681
  %v689 = vmul.f32 %v687, %v593
  %691 = vrot.lane.b32.xlu0 %v688, 64
  %v692 = vpop.permute.xlu0 %691
  %v694 = vmul.f32 %v687, %v692
  %696 = vrot.lane.b32.xlu0 %v694, 32
  %v697 = vpop.permute.xlu0 %696
  %v699 = vadd.f32 %v689, %v697
  %v700 = vtanh.pop %v699
  %702 = vrot.lane.b32.xlu0 %v700, 64
  %v703 = vpop.permute.xlu0 %702
  %v705 = vmul.f32 %v687, %v703
  %707 = vrot.lane.b32.xlu0 %v705, 32
  %v708 = vpop.permute.xlu0 %707
  %710 = vst.msk [vmem:[#allocation2 + $0x20] sm:$0xff] %vm183, %v708
  %v711 = vld [vmem:[%s2] sm:$0xff]
  %v712 = vld [vmem:[%s2 + $0x8] sm:$0xff]
  %v713 = vld [vmem:[%s2 + $0x10] sm:$0xff]
  %v714 = vld [vmem:[%s2 + $0x18] sm:$0xff]
  %v715 = vsel %vm183, %v708, 0
  %717 = vmatprep.subr.mxu0 0.0
  %718 = vmatpush1.msra.mxu0 0.0
  %719 = vmatprep.subr.mxu0 0.0
  %720 = vmatpush1.msra.mxu0 0.0
  %721 = vmatprep.subr.mxu0 0.0
  %722 = vmatpush1.msra.mxu0 0.0
  %723 = vmatprep.subr.mxu0 0.0
  %724 = vmatpush1.msra.mxu0 0.0
  %725 = vmatprep.subr.mxu0 0.0
  %726 = vmatpush1.msra.mxu0 0.0
  %727 = vmatprep.subr.mxu0 0.0
  %728 = vmatpush1.msra.mxu0 0.0
  %729 = vmatprep.subr.mxu0 0.0
  %730 = vmatpush1.msra.mxu0 0.0
  %731 = vmatprep.subr.mxu0 0.0
  %732 = vmatpush1.msra.mxu0 0.0
  %733 = vmatprep.subr.mxu0 0.0
  %734 = vmatpush1.msra.mxu0 0.0
  %735 = vmatprep.subr.mxu0 0.0
  %736 = vmatpush1.msra.mxu0 0.0
  %737 = vmatprep.subr.mxu0 0.0
  %738 = vmatpush1.msra.mxu0 0.0
  %739 = vmatprep.subr.mxu0 0.0
  %740 = vmatpush1.msra.mxu0 0.0
  %741 = vmatprep.subr.mxu0 0.0
  %742 = vmatpush1.msra.mxu0 %v714
  %743 = vmatprep.subr.mxu0 0.0
  %744 = vmatpush1.msra.mxu0 %v713
  %745 = vmatprep.subr.mxu0 0.0
  %746 = vmatpush1.msra.mxu0 %v712
  %747 = vmatprep.subr.mxu0 0.0
  %748 = vmatpush1.msra.mxu0 %v711
  %749 = vmatprep.subr.mxu0 0.0
  %750 = vmatpush2.msra.mxu0 0.0
  %751 = vmatprep.subr.mxu0 0.0
  %752 = vmatpush2.msra.mxu0 0.0
  %753 = vmatprep.subr.mxu0 0.0
  %754 = vmatpush2.msra.mxu0 0.0
  %755 = vmatprep.subr.mxu0 0.0
  %756 = vmatpush2.msra.mxu0 0.0
  %757 = vmatprep.subr.mxu0 0.0
  %758 = vmatpush2.msra.mxu0 0.0
  %759 = vmatprep.subr.mxu0 0.0
  %760 = vmatpush2.msra.mxu0 0.0
  %761 = vmatprep.subr.mxu0 0.0
  %762 = vmatpush2.msra.mxu0 0.0
  %763 = vmatprep.subr.mxu0 0.0
  %764 = vmatpush2.msra.mxu0 0.0
  %765 = vmatprep.subr.mxu0 0.0
  %766 = vmatpush2.msra.mxu0 0.0
  %767 = vmatprep.subr.mxu0 0.0
  %768 = vmatpush2.msra.mxu0 0.0
  %769 = vmatprep.subr.mxu0 0.0
  %770 = vmatpush2.msra.mxu0 0.0
  %771 = vmatprep.subr.mxu0 0.0
  %772 = vmatpush2.msra.mxu0 0.0
  %773 = vmatprep.subr.mxu0 0.0
  %774 = vmatpush2.msra.mxu0 0.0
  %775 = vmatprep.subr.mxu0 0.0
  %776 = vmatpush2.msra.mxu0 0.0
  %777 = vmatprep.subr.mxu0 0.0
  %778 = vmatpush2.msra.mxu0 0.0
  %779 = vmatprep.subr.mxu0 0.0
  %780 = vmatpush2.msra.mxu0 0.0
  %781 = vmatprep.mubr.f32.mxu0 0.0
  %782 = vmatmul.mubr.f32.gmra.mxu0 %v715
  %v783 = vpop.f32.mrf.mxu0
  %v784 = vadd.f32 0.0, %v783
  %v785 = vpop.f32.mrf.mxu0
  %786 = vdwg.mxu0
  %v787 = vadd.f32 %v166, %v784
  %v788 = vxor.u32 %v787, 2147483648
  %v789 = vmul.f32 %v788, 1.442695
  %v790 = vpow.pop %v789
  %v791 = vadd.f32 %v790, 1.0
  %v792 = vrcp.pop %v791
  %v793 = vmul.f32 1.0, %v792
  %v794 = vtanh.pop %v787
  %v795 = vmul.f32 %v793, %v699
  %797 = vrot.lane.b32.xlu0 %v794, 64
  %v798 = vpop.permute.xlu0 %797
  %v800 = vmul.f32 %v793, %v798
  %802 = vrot.lane.b32.xlu0 %v800, 32
  %v803 = vpop.permute.xlu0 %802
  %v805 = vadd.f32 %v795, %v803
  %v806 = vtanh.pop %v805
  %808 = vrot.lane.b32.xlu0 %v806, 64
  %v809 = vpop.permute.xlu0 %808
  %v811 = vmul.f32 %v793, %v809
  %813 = vrot.lane.b32.xlu0 %v811, 32
  %v814 = vpop.permute.xlu0 %813
  %816 = vst.msk [vmem:[#allocation2 + $0x28] sm:$0xff] %vm183, %v814
  %v817 = vld [vmem:[%s2] sm:$0xff]
  %v818 = vld [vmem:[%s2 + $0x8] sm:$0xff]
  %v819 = vld [vmem:[%s2 + $0x10] sm:$0xff]
  %v820 = vld [vmem:[%s2 + $0x18] sm:$0xff]
  %v821 = vsel %vm183, %v814, 0
  %823 = vmatprep.subr.mxu0 0.0
  %824 = vmatpush1.msra.mxu0 0.0
  %825 = vmatprep.subr.mxu0 0.0
  %826 = vmatpush1.msra.mxu0 0.0
  %827 = vmatprep.subr.mxu0 0.0
  %828 = vmatpush1.msra.mxu0 0.0
  %829 = vmatprep.subr.mxu0 0.0
  %830 = vmatpush1.msra.mxu0 0.0
  %831 = vmatprep.subr.mxu0 0.0
  %832 = vmatpush1.msra.mxu0 0.0
  %833 = vmatprep.subr.mxu0 0.0
  %834 = vmatpush1.msra.mxu0 0.0
  %835 = vmatprep.subr.mxu0 0.0
  %836 = vmatpush1.msra.mxu0 0.0
  %837 = vmatprep.subr.mxu0 0.0
  %838 = vmatpush1.msra.mxu0 0.0
  %839 = vmatprep.subr.mxu0 0.0
  %840 = vmatpush1.msra.mxu0 0.0
  %841 = vmatprep.subr.mxu0 0.0
  %842 = vmatpush1.msra.mxu0 0.0
  %843 = vmatprep.subr.mxu0 0.0
  %844 = vmatpush1.msra.mxu0 0.0
  %845 = vmatprep.subr.mxu0 0.0
  %846 = vmatpush1.msra.mxu0 0.0
  %847 = vmatprep.subr.mxu0 0.0
  %848 = vmatpush1.msra.mxu0 %v820
  %849 = vmatprep.subr.mxu0 0.0
  %850 = vmatpush1.msra.mxu0 %v819
  %851 = vmatprep.subr.mxu0 0.0
  %852 = vmatpush1.msra.mxu0 %v818
  %853 = vmatprep.subr.mxu0 0.0
  %854 = vmatpush1.msra.mxu0 %v817
  %855 = vmatprep.subr.mxu0 0.0
  %856 = vmatpush2.msra.mxu0 0.0
  %857 = vmatprep.subr.mxu0 0.0
  %858 = vmatpush2.msra.mxu0 0.0
  %859 = vmatprep.subr.mxu0 0.0
  %860 = vmatpush2.msra.mxu0 0.0
  %861 = vmatprep.subr.mxu0 0.0
  %862 = vmatpush2.msra.mxu0 0.0
  %863 = vmatprep.subr.mxu0 0.0
  %864 = vmatpush2.msra.mxu0 0.0
  %865 = vmatprep.subr.mxu0 0.0
  %866 = vmatpush2.msra.mxu0 0.0
  %867 = vmatprep.subr.mxu0 0.0
  %868 = vmatpush2.msra.mxu0 0.0
  %869 = vmatprep.subr.mxu0 0.0
  %870 = vmatpush2.msra.mxu0 0.0
  %871 = vmatprep.subr.mxu0 0.0
  %872 = vmatpush2.msra.mxu0 0.0
  %873 = vmatprep.subr.mxu0 0.0
  %874 = vmatpush2.msra.mxu0 0.0
  %875 = vmatprep.subr.mxu0 0.0
  %876 = vmatpush2.msra.mxu0 0.0
  %877 = vmatprep.subr.mxu0 0.0
  %878 = vmatpush2.msra.mxu0 0.0
  %879 = vmatprep.subr.mxu0 0.0
  %880 = vmatpush2.msra.mxu0 0.0
  %881 = vmatprep.subr.mxu0 0.0
  %882 = vmatpush2.msra.mxu0 0.0
  %883 = vmatprep.subr.mxu0 0.0
  %884 = vmatpush2.msra.mxu0 0.0
  %885 = vmatprep.subr.mxu0 0.0
  %886 = vmatpush2.msra.mxu0 0.0
  %887 = vmatprep.mubr.f32.mxu0 0.0
  %888 = vmatmul.mubr.f32.gmra.mxu0 %v821
  %v889 = vpop.f32.mrf.mxu0
  %v890 = vadd.f32 0.0, %v889
  %v891 = vpop.f32.mrf.mxu0
  %892 = vdwg.mxu0
  %v893 = vadd.f32 %v171, %v890
  %v894 = vxor.u32 %v893, 2147483648
  %v895 = vmul.f32 %v894, 1.442695
  %v896 = vpow.pop %v895
  %v897 = vadd.f32 %v896, 1.0
  %v898 = vrcp.pop %v897
  %v899 = vmul.f32 1.0, %v898
  %v900 = vtanh.pop %v893
  %v901 = vmul.f32 %v899, %v805
  %903 = vrot.lane.b32.xlu0 %v900, 64
  %v904 = vpop.permute.xlu0 %903
  %v906 = vmul.f32 %v899, %v904
  %908 = vrot.lane.b32.xlu0 %v906, 32
  %v909 = vpop.permute.xlu0 %908
  %v911 = vadd.f32 %v901, %v909
  %v912 = vtanh.pop %v911
  %914 = vrot.lane.b32.xlu0 %v912, 64
  %v915 = vpop.permute.xlu0 %914
  %v917 = vmul.f32 %v899, %v915
  %919 = vrot.lane.b32.xlu0 %v917, 32
  %v920 = vpop.permute.xlu0 %919
  %922 = vst.msk [vmem:[#allocation2 + $0x30] sm:$0xff] %vm183, %v920
  %v923 = vld [vmem:[%s2] sm:$0xff]
  %v924 = vld [vmem:[%s2 + $0x8] sm:$0xff]
  %v925 = vld [vmem:[%s2 + $0x10] sm:$0xff]
  %v926 = vld [vmem:[%s2 + $0x18] sm:$0xff]
  %v927 = vsel %vm183, %v920, 0
  %929 = vmatprep.subr.mxu0 0.0
  %930 = vmatpush1.msra.mxu0 0.0
  %931 = vmatprep.subr.mxu0 0.0
  %932 = vmatpush1.msra.mxu0 0.0
  %933 = vmatprep.subr.mxu0 0.0
  %934 = vmatpush1.msra.mxu0 0.0
  %935 = vmatprep.subr.mxu0 0.0
  %936 = vmatpush1.msra.mxu0 0.0
  %937 = vmatprep.subr.mxu0 0.0
  %938 = vmatpush1.msra.mxu0 0.0
  %939 = vmatprep.subr.mxu0 0.0
  %940 = vmatpush1.msra.mxu0 0.0
  %941 = vmatprep.subr.mxu0 0.0
  %942 = vmatpush1.msra.mxu0 0.0
  %943 = vmatprep.subr.mxu0 0.0
  %944 = vmatpush1.msra.mxu0 0.0
  %945 = vmatprep.subr.mxu0 0.0
  %946 = vmatpush1.msra.mxu0 0.0
  %947 = vmatprep.subr.mxu0 0.0
  %948 = vmatpush1.msra.mxu0 0.0
  %949 = vmatprep.subr.mxu0 0.0
  %950 = vmatpush1.msra.mxu0 0.0
  %951 = vmatprep.subr.mxu0 0.0
  %952 = vmatpush1.msra.mxu0 0.0
  %953 = vmatprep.subr.mxu0 0.0
  %954 = vmatpush1.msra.mxu0 %v926
  %955 = vmatprep.subr.mxu0 0.0
  %956 = vmatpush1.msra.mxu0 %v925
  %957 = vmatprep.subr.mxu0 0.0
  %958 = vmatpush1.msra.mxu0 %v924
  %959 = vmatprep.subr.mxu0 0.0
  %960 = vmatpush1.msra.mxu0 %v923
  %961 = vmatprep.subr.mxu0 0.0
  %962 = vmatpush2.msra.mxu0 0.0
  %963 = vmatprep.subr.mxu0 0.0
  %964 = vmatpush2.msra.mxu0 0.0
  %965 = vmatprep.subr.mxu0 0.0
  %966 = vmatpush2.msra.mxu0 0.0
  %967 = vmatprep.subr.mxu0 0.0
  %968 = vmatpush2.msra.mxu0 0.0
  %969 = vmatprep.subr.mxu0 0.0
  %970 = vmatpush2.msra.mxu0 0.0
  %971 = vmatprep.subr.mxu0 0.0
  %972 = vmatpush2.msra.mxu0 0.0
  %973 = vmatprep.subr.mxu0 0.0
  %974 = vmatpush2.msra.mxu0 0.0
  %975 = vmatprep.subr.mxu0 0.0
  %976 = vmatpush2.msra.mxu0 0.0
  %977 = vmatprep.subr.mxu0 0.0
  %978 = vmatpush2.msra.mxu0 0.0
  %979 = vmatprep.subr.mxu0 0.0
  %980 = vmatpush2.msra.mxu0 0.0
  %981 = vmatprep.subr.mxu0 0.0
  %982 = vmatpush2.msra.mxu0 0.0
  %983 = vmatprep.subr.mxu0 0.0
  %984 = vmatpush2.msra.mxu0 0.0
  %985 = vmatprep.subr.mxu0 0.0
  %986 = vmatpush2.msra.mxu0 0.0
  %987 = vmatprep.subr.mxu0 0.0
  %988 = vmatpush2.msra.mxu0 0.0
  %989 = vmatprep.subr.mxu0 0.0
  %990 = vmatpush2.msra.mxu0 0.0
  %991 = vmatprep.subr.mxu0 0.0
  %992 = vmatpush2.msra.mxu0 0.0
  %993 = vmatprep.mubr.f32.mxu0 0.0
  %994 = vmatmul.mubr.f32.gmra.mxu0 %v927
  %v995 = vpop.f32.mrf.mxu0
  %v996 = vadd.f32 0.0, %v995
  %v997 = vpop.f32.mrf.mxu0
  %998 = vdwg.mxu0
  %v999 = vadd.f32 %v176, %v996
  %v1000 = vxor.u32 %v999, 2147483648
  %v1001 = vmul.f32 %v1000, 1.442695
  %v1002 = vpow.pop %v1001
  %v1003 = vadd.f32 %v1002, 1.0
  %v1004 = vrcp.pop %v1003
  %v1005 = vmul.f32 1.0, %v1004
  %v1006 = vtanh.pop %v999
  %v1007 = vmul.f32 %v1005, %v911
  %1009 = vrot.lane.b32.xlu0 %v1006, 64
  %v1010 = vpop.permute.xlu0 %1009
  %v1012 = vmul.f32 %v1005, %v1010
  %1014 = vrot.lane.b32.xlu0 %v1012, 32
  %v1015 = vpop.permute.xlu0 %1014
  %v1017 = vadd.f32 %v1007, %v1015
  %v1018 = vtanh.pop %v1017
  %1020 = vrot.lane.b32.xlu0 %v1018, 64
  %v1021 = vpop.permute.xlu0 %1020
  %v1023 = vmul.f32 %v1005, %v1021
  %1025 = vrot.lane.b32.xlu0 %v1023, 32
  %v1026 = vpop.permute.xlu0 %1025
  %1028 = vst.msk [vmem:[#allocation2 + $0x38] sm:$0xff] %vm183, %v1026
  %v1029 = vld [vmem:[#allocation2] sm:$0xff]
  %v1030 = vld [vmem:[#allocation2 + $0x8] sm:$0xff]
  %v1031 = vld [vmem:[#allocation2 + $0x10] sm:$0xff]
  %v1032 = vld [vmem:[#allocation2 + $0x18] sm:$0xff]
  %v1033 = vld [vmem:[#allocation2 + $0x20] sm:$0xff]
  %v1034 = vld [vmem:[#allocation2 + $0x28] sm:$0xff]
  %v1035 = vld [vmem:[#allocation2 + $0x30] sm:$0xff]
  %v1036 = vld [vmem:[#allocation2 + $0x38] sm:$0xff]
  %v1037 = vld [vmem:[%s4] sm:$0xff]
  %v1038 = vld [vmem:[%s4 + $0x8] sm:$0xff]
  %v1039 = vld [vmem:[%s4 + $0x10] sm:$0xff]
  %v1040 = vld [vmem:[%s4 + $0x18] sm:$0xff]
  %v1041 = vld [vmem:[%s6] sm:$0x1]
  %v1043 = vlaneseq
  %v1044 = vshrl.u32 %v1043, 7
  %v1045 = vsub.s32 0, %v1044
  %v1046 = vrot.slane %v1041, %v1045
  %v1049 = vsel %vm183, %v1029, 0
  %v1052 = vsel %vm183, %v1030, 0
  %v1055 = vsel %vm183, %v1031, 0
  %v1058 = vsel %vm183, %v1032, 0
  %v1061 = vsel %vm183, %v1033, 0
  %v1064 = vsel %vm183, %v1034, 0
  %v1067 = vsel %vm183, %v1035, 0
  %v1070 = vsel %vm183, %v1036, 0
  %1072 = vmatprep.subr.mxu0 0.0
  %1073 = vmatpush1.msra.mxu0 0.0
  %1074 = vmatprep.subr.mxu0 0.0
  %1075 = vmatpush1.msra.mxu0 0.0
  %1076 = vmatprep.subr.mxu0 0.0
  %1077 = vmatpush1.msra.mxu0 0.0
  %1078 = vmatprep.subr.mxu0 0.0
  %1079 = vmatpush1.msra.mxu0 0.0
  %1080 = vmatprep.subr.mxu0 0.0
  %1081 = vmatpush1.msra.mxu0 0.0
  %1082 = vmatprep.subr.mxu0 0.0
  %1083 = vmatpush1.msra.mxu0 0.0
  %1084 = vmatprep.subr.mxu0 0.0
  %1085 = vmatpush1.msra.mxu0 0.0
  %1086 = vmatprep.subr.mxu0 0.0
  %1087 = vmatpush1.msra.mxu0 0.0
  %1088 = vmatprep.subr.mxu0 0.0
  %1089 = vmatpush1.msra.mxu0 0.0
  %1090 = vmatprep.subr.mxu0 0.0
  %1091 = vmatpush1.msra.mxu0 0.0
  %1092 = vmatprep.subr.mxu0 0.0
  %1093 = vmatpush1.msra.mxu0 0.0
  %1094 = vmatprep.subr.mxu0 0.0
  %1095 = vmatpush1.msra.mxu0 0.0
  %1096 = vmatprep.subr.mxu0 0.0
  %1097 = vmatpush1.msra.mxu0 %v1040
  %1098 = vmatprep.subr.mxu0 0.0
  %1099 = vmatpush1.msra.mxu0 %v1039
  %1100 = vmatprep.subr.mxu0 0.0
  %1101 = vmatpush1.msra.mxu0 %v1038
  %1102 = vmatprep.subr.mxu0 0.0
  %1103 = vmatpush1.msra.mxu0 %v1037
  %1104 = vmatprep.subr.mxu0 0.0
  %1105 = vmatpush2.msra.mxu0 0.0
  %1106 = vmatprep.subr.mxu0 0.0
  %1107 = vmatpush2.msra.mxu0 0.0
  %1108 = vmatprep.subr.mxu0 0.0
  %1109 = vmatpush2.msra.mxu0 0.0
  %1110 = vmatprep.subr.mxu0 0.0
  %1111 = vmatpush2.msra.mxu0 0.0
  %1112 = vmatprep.subr.mxu0 0.0
  %1113 = vmatpush2.msra.mxu0 0.0
  %1114 = vmatprep.subr.mxu0 0.0
  %1115 = vmatpush2.msra.mxu0 0.0
  %1116 = vmatprep.subr.mxu0 0.0
  %1117 = vmatpush2.msra.mxu0 0.0
  %1118 = vmatprep.subr.mxu0 0.0
  %1119 = vmatpush2.msra.mxu0 0.0
  %1120 = vmatprep.subr.mxu0 0.0
  %1121 = vmatpush2.msra.mxu0 0.0
  %1122 = vmatprep.subr.mxu0 0.0
  %1123 = vmatpush2.msra.mxu0 0.0
  %1124 = vmatprep.subr.mxu0 0.0
  %1125 = vmatpush2.msra.mxu0 0.0
  %1126 = vmatprep.subr.mxu0 0.0
  %1127 = vmatpush2.msra.mxu0 0.0
  %1128 = vmatprep.subr.mxu0 0.0
  %1129 = vmatpush2.msra.mxu0 0.0
  %1130 = vmatprep.subr.mxu0 0.0
  %1131 = vmatpush2.msra.mxu0 0.0
  %1132 = vmatprep.subr.mxu0 0.0
  %1133 = vmatpush2.msra.mxu0 0.0
  %1134 = vmatprep.subr.mxu0 0.0
  %1135 = vmatpush2.msra.mxu0 0.0
  %1136 = vmatprep.mubr.f32.mxu0 0.0
  %1137 = vmatmul.mubr.f32.gmra.mxu0 %v1049
  %v1138 = vpop.f32.mrf.mxu0
  %v1139 = vadd.f32 %v1046, %v1138
  %v1140 = vpop.f32.mrf.mxu0
  %1141 = vmatprep.mubr.f32.mxu0 0.0
  %1142 = vmatmul.mubr.f32.gmra.mxu0 %v1052
  %v1143 = vpop.f32.mrf.mxu0
  %v1144 = vadd.f32 %v1046, %v1143
  %v1145 = vpop.f32.mrf.mxu0
  %1146 = vmatprep.mubr.f32.mxu0 0.0
  %1147 = vmatmul.mubr.f32.gmra.mxu0 %v1055
  %v1148 = vpop.f32.mrf.mxu0
  %v1149 = vadd.f32 %v1046, %v1148
  %v1150 = vpop.f32.mrf.mxu0
  %1151 = vmatprep.mubr.f32.mxu0 0.0
  %1152 = vmatmul.mubr.f32.gmra.mxu0 %v1058
  %v1153 = vpop.f32.mrf.mxu0
  %v1154 = vadd.f32 %v1046, %v1153
  %v1155 = vpop.f32.mrf.mxu0
  %1156 = vmatprep.mubr.f32.mxu0 0.0
  %1157 = vmatmul.mubr.f32.gmra.mxu0 %v1061
  %v1158 = vpop.f32.mrf.mxu0
  %v1159 = vadd.f32 %v1046, %v1158
  %v1160 = vpop.f32.mrf.mxu0
  %1161 = vmatprep.mubr.f32.mxu0 0.0
  %1162 = vmatmul.mubr.f32.gmra.mxu0 %v1064
  %v1163 = vpop.f32.mrf.mxu0
  %v1164 = vadd.f32 %v1046, %v1163
  %v1165 = vpop.f32.mrf.mxu0
  %1166 = vmatprep.mubr.f32.mxu0 0.0
  %1167 = vmatmul.mubr.f32.gmra.mxu0 %v1067
  %v1168 = vpop.f32.mrf.mxu0
  %v1169 = vadd.f32 %v1046, %v1168
  %v1170 = vpop.f32.mrf.mxu0
  %1171 = vmatprep.mubr.f32.mxu0 0.0
  %1172 = vmatmul.mubr.f32.gmra.mxu0 %v1070
  %v1173 = vpop.f32.mrf.mxu0
  %v1174 = vadd.f32 %v1046, %v1173
  %v1175 = vpop.f32.mrf.mxu0
  %1176 = vdwg.mxu0
  %v1177 = vld [vmem:[%s5] sm:$0xff]
  %v1178 = vld [vmem:[%s5 + $0x8] sm:$0xff]
  %v1179 = vld [vmem:[%s5 + $0x10] sm:$0xff]
  %v1180 = vld [vmem:[%s5 + $0x18] sm:$0xff]
  %1181 = vmatprep.subr.mxu0 0.0
  %1182 = vmatpush1.msra.mxu0 0.0
  %1183 = vmatprep.subr.mxu0 0.0
  %1184 = vmatpush1.msra.mxu0 0.0
  %1185 = vmatprep.subr.mxu0 0.0
  %1186 = vmatpush1.msra.mxu0 0.0
  %1187 = vmatprep.subr.mxu0 0.0
  %1188 = vmatpush1.msra.mxu0 0.0
  %1189 = vmatprep.subr.mxu0 0.0
  %1190 = vmatpush1.msra.mxu0 0.0
  %1191 = vmatprep.subr.mxu0 0.0
  %1192 = vmatpush1.msra.mxu0 0.0
  %1193 = vmatprep.subr.mxu0 0.0
  %1194 = vmatpush1.msra.mxu0 0.0
  %1195 = vmatprep.subr.mxu0 0.0
  %1196 = vmatpush1.msra.mxu0 0.0
  %1197 = vmatprep.subr.mxu0 0.0
  %1198 = vmatpush1.msra.mxu0 0.0
  %1199 = vmatprep.subr.mxu0 0.0
  %1200 = vmatpush1.msra.mxu0 0.0
  %1201 = vmatprep.subr.mxu0 0.0
  %1202 = vmatpush1.msra.mxu0 0.0
  %1203 = vmatprep.subr.mxu0 0.0
  %1204 = vmatpush1.msra.mxu0 0.0
  %1205 = vmatprep.subr.mxu0 0.0
  %1206 = vmatpush1.msra.mxu0 %v1180
  %1207 = vmatprep.subr.mxu0 0.0
  %1208 = vmatpush1.msra.mxu0 %v1179
  %1209 = vmatprep.subr.mxu0 0.0
  %1210 = vmatpush1.msra.mxu0 %v1178
  %1211 = vmatprep.subr.mxu0 0.0
  %1212 = vmatpush1.msra.mxu0 %v1177
  %1213 = vmatprep.subr.mxu0 0.0
  %1214 = vmatpush2.msra.mxu0 0.0
  %1215 = vmatprep.subr.mxu0 0.0
  %1216 = vmatpush2.msra.mxu0 0.0
  %1217 = vmatprep.subr.mxu0 0.0
  %1218 = vmatpush2.msra.mxu0 0.0
  %1219 = vmatprep.subr.mxu0 0.0
  %1220 = vmatpush2.msra.mxu0 0.0
  %1221 = vmatprep.subr.mxu0 0.0
  %1222 = vmatpush2.msra.mxu0 0.0
  %1223 = vmatprep.subr.mxu0 0.0
  %1224 = vmatpush2.msra.mxu0 0.0
  %1225 = vmatprep.subr.mxu0 0.0
  %1226 = vmatpush2.msra.mxu0 0.0
  %1227 = vmatprep.subr.mxu0 0.0
  %1228 = vmatpush2.msra.mxu0 0.0
  %1229 = vmatprep.subr.mxu0 0.0
  %1230 = vmatpush2.msra.mxu0 0.0
  %1231 = vmatprep.subr.mxu0 0.0
  %1232 = vmatpush2.msra.mxu0 0.0
  %1233 = vmatprep.subr.mxu0 0.0
  %1234 = vmatpush2.msra.mxu0 0.0
  %1235 = vmatprep.subr.mxu0 0.0
  %1236 = vmatpush2.msra.mxu0 0.0
  %1237 = vmatprep.subr.mxu0 0.0
  %1238 = vmatpush2.msra.mxu0 0.0
  %1239 = vmatprep.subr.mxu0 0.0
  %1240 = vmatpush2.msra.mxu0 0.0
  %1241 = vmatprep.subr.mxu0 0.0
  %1242 = vmatpush2.msra.mxu0 0.0
  %1243 = vmatprep.subr.mxu0 0.0
  %1244 = vmatpush2.msra.mxu0 0.0
  %1245 = vmatprep.mubr.f32.mxu0 0.0
  %1246 = vmatmul.mubr.f32.gmra.mxu0 %v185
  %v1247 = vpop.f32.mrf.mxu0
  %v1248 = vadd.f32 0.0, %v1247
  %v1249 = vpop.f32.mrf.mxu0
  %1250 = vdwg.mxu0
  %v1251 = vadd.f32 %v1139, %v1248
  %v1252 = vxor.u32 %v1251, 2147483648
  %v1253 = vmul.f32 %v1252, 1.442695
  %v1254 = vpow.pop %v1253
  %v1255 = vadd.f32 %v1254, 1.0
  %v1256 = vrcp.pop %v1255
  %v1257 = vmul.f32 1.0, %v1256
  %v1258 = vtanh.pop %v1251
  %v1259 = vmul.f32 %v1257, 0.0
  %1261 = vrot.lane.b32.xlu0 %v1258, 64
  %v1262 = vpop.permute.xlu0 %1261
  %v1264 = vmul.f32 %v1257, %v1262
  %1266 = vrot.lane.b32.xlu0 %v1264, 32
  %v1267 = vpop.permute.xlu0 %1266
  %v1269 = vadd.f32 %v1259, %v1267
  %v1270 = vtanh.pop %v1269
  %1272 = vrot.lane.b32.xlu0 %v1270, 64
  %v1273 = vpop.permute.xlu0 %1272
  %v1275 = vmul.f32 %v1257, %v1273
  %1277 = vrot.lane.b32.xlu0 %v1275, 32
  %v1278 = vpop.permute.xlu0 %1277
  %v1279 = vsel %vm183, %v1278, 0
  %1281 = vmatprep.subr.mxu0 0.0
  %1282 = vmatpush1.msra.mxu0 0.0
  %1283 = vmatprep.subr.mxu0 0.0
  %1284 = vmatpush1.msra.mxu0 0.0
  %1285 = vmatprep.subr.mxu0 0.0
  %1286 = vmatpush1.msra.mxu0 0.0
  %1287 = vmatprep.subr.mxu0 0.0
  %1288 = vmatpush1.msra.mxu0 0.0
  %1289 = vmatprep.subr.mxu0 0.0
  %1290 = vmatpush1.msra.mxu0 0.0
  %1291 = vmatprep.subr.mxu0 0.0
  %1292 = vmatpush1.msra.mxu0 0.0
  %1293 = vmatprep.subr.mxu0 0.0
  %1294 = vmatpush1.msra.mxu0 0.0
  %1295 = vmatprep.subr.mxu0 0.0
  %1296 = vmatpush1.msra.mxu0 0.0
  %1297 = vmatprep.subr.mxu0 0.0
  %1298 = vmatpush1.msra.mxu0 0.0
  %1299 = vmatprep.subr.mxu0 0.0
  %1300 = vmatpush1.msra.mxu0 0.0
  %1301 = vmatprep.subr.mxu0 0.0
  %1302 = vmatpush1.msra.mxu0 0.0
  %1303 = vmatprep.subr.mxu0 0.0
  %1304 = vmatpush1.msra.mxu0 0.0
  %1305 = vmatprep.subr.mxu0 0.0
  %1306 = vmatpush1.msra.mxu0 %v1180
  %1307 = vmatprep.subr.mxu0 0.0
  %1308 = vmatpush1.msra.mxu0 %v1179
  %1309 = vmatprep.subr.mxu0 0.0
  %1310 = vmatpush1.msra.mxu0 %v1178
  %1311 = vmatprep.subr.mxu0 0.0
  %1312 = vmatpush1.msra.mxu0 %v1177
  %1313 = vmatprep.subr.mxu0 0.0
  %1314 = vmatpush2.msra.mxu0 0.0
  %1315 = vmatprep.subr.mxu0 0.0
  %1316 = vmatpush2.msra.mxu0 0.0
  %1317 = vmatprep.subr.mxu0 0.0
  %1318 = vmatpush2.msra.mxu0 0.0
  %1319 = vmatprep.subr.mxu0 0.0
  %1320 = vmatpush2.msra.mxu0 0.0
  %1321 = vmatprep.subr.mxu0 0.0
  %1322 = vmatpush2.msra.mxu0 0.0
  %1323 = vmatprep.subr.mxu0 0.0
  %1324 = vmatpush2.msra.mxu0 0.0
  %1325 = vmatprep.subr.mxu0 0.0
  %1326 = vmatpush2.msra.mxu0 0.0
  %1327 = vmatprep.subr.mxu0 0.0
  %1328 = vmatpush2.msra.mxu0 0.0
  %1329 = vmatprep.subr.mxu0 0.0
  %1330 = vmatpush2.msra.mxu0 0.0
  %1331 = vmatprep.subr.mxu0 0.0
  %1332 = vmatpush2.msra.mxu0 0.0
  %1333 = vmatprep.subr.mxu0 0.0
  %1334 = vmatpush2.msra.mxu0 0.0
  %1335 = vmatprep.subr.mxu0 0.0
  %1336 = vmatpush2.msra.mxu0 0.0
  %1337 = vmatprep.subr.mxu0 0.0
  %1338 = vmatpush2.msra.mxu0 0.0
  %1339 = vmatprep.subr.mxu0 0.0
  %1340 = vmatpush2.msra.mxu0 0.0
  %1341 = vmatprep.subr.mxu0 0.0
  %1342 = vmatpush2.msra.mxu0 0.0
  %1343 = vmatprep.subr.mxu0 0.0
  %1344 = vmatpush2.msra.mxu0 0.0
  %1345 = vmatprep.mubr.f32.mxu0 0.0
  %1346 = vmatmul.mubr.f32.gmra.mxu0 %v1279
  %v1347 = vpop.f32.mrf.mxu0
  %v1348 = vadd.f32 0.0, %v1347
  %v1349 = vpop.f32.mrf.mxu0
  %1350 = vdwg.mxu0
  %v1351 = vadd.f32 %v1144, %v1348
  %v1352 = vxor.u32 %v1351, 2147483648
  %v1353 = vmul.f32 %v1352, 1.442695
  %v1354 = vpow.pop %v1353
  %v1355 = vadd.f32 %v1354, 1.0
  %v1356 = vrcp.pop %v1355
  %v1357 = vmul.f32 1.0, %v1356
  %v1358 = vtanh.pop %v1351
  %v1359 = vmul.f32 %v1357, %v1269
  %1361 = vrot.lane.b32.xlu0 %v1358, 64
  %v1362 = vpop.permute.xlu0 %1361
  %v1364 = vmul.f32 %v1357, %v1362
  %1366 = vrot.lane.b32.xlu0 %v1364, 32
  %v1367 = vpop.permute.xlu0 %1366
  %v1369 = vadd.f32 %v1359, %v1367
  %v1370 = vtanh.pop %v1369
  %1372 = vrot.lane.b32.xlu0 %v1370, 64
  %v1373 = vpop.permute.xlu0 %1372
  %v1375 = vmul.f32 %v1357, %v1373
  %1377 = vrot.lane.b32.xlu0 %v1375, 32
  %v1378 = vpop.permute.xlu0 %1377
  %v1379 = vsel %vm183, %v1378, 0
  %1381 = vmatprep.subr.mxu0 0.0
  %1382 = vmatpush1.msra.mxu0 0.0
  %1383 = vmatprep.subr.mxu0 0.0
  %1384 = vmatpush1.msra.mxu0 0.0
  %1385 = vmatprep.subr.mxu0 0.0
  %1386 = vmatpush1.msra.mxu0 0.0
  %1387 = vmatprep.subr.mxu0 0.0
  %1388 = vmatpush1.msra.mxu0 0.0
  %1389 = vmatprep.subr.mxu0 0.0
  %1390 = vmatpush1.msra.mxu0 0.0
  %1391 = vmatprep.subr.mxu0 0.0
  %1392 = vmatpush1.msra.mxu0 0.0
  %1393 = vmatprep.subr.mxu0 0.0
  %1394 = vmatpush1.msra.mxu0 0.0
  %1395 = vmatprep.subr.mxu0 0.0
  %1396 = vmatpush1.msra.mxu0 0.0
  %1397 = vmatprep.subr.mxu0 0.0
  %1398 = vmatpush1.msra.mxu0 0.0
  %1399 = vmatprep.subr.mxu0 0.0
  %1400 = vmatpush1.msra.mxu0 0.0
  %1401 = vmatprep.subr.mxu0 0.0
  %1402 = vmatpush1.msra.mxu0 0.0
  %1403 = vmatprep.subr.mxu0 0.0
  %1404 = vmatpush1.msra.mxu0 0.0
  %1405 = vmatprep.subr.mxu0 0.0
  %1406 = vmatpush1.msra.mxu0 %v1180
  %1407 = vmatprep.subr.mxu0 0.0
  %1408 = vmatpush1.msra.mxu0 %v1179
  %1409 = vmatprep.subr.mxu0 0.0
  %1410 = vmatpush1.msra.mxu0 %v1178
  %1411 = vmatprep.subr.mxu0 0.0
  %1412 = vmatpush1.msra.mxu0 %v1177
  %1413 = vmatprep.subr.mxu0 0.0
  %1414 = vmatpush2.msra.mxu0 0.0
  %1415 = vmatprep.subr.mxu0 0.0
  %1416 = vmatpush2.msra.mxu0 0.0
  %1417 = vmatprep.subr.mxu0 0.0
  %1418 = vmatpush2.msra.mxu0 0.0
  %1419 = vmatprep.subr.mxu0 0.0
  %1420 = vmatpush2.msra.mxu0 0.0
  %1421 = vmatprep.subr.mxu0 0.0
  %1422 = vmatpush2.msra.mxu0 0.0
  %1423 = vmatprep.subr.mxu0 0.0
  %1424 = vmatpush2.msra.mxu0 0.0
  %1425 = vmatprep.subr.mxu0 0.0
  %1426 = vmatpush2.msra.mxu0 0.0
  %1427 = vmatprep.subr.mxu0 0.0
  %1428 = vmatpush2.msra.mxu0 0.0
  %1429 = vmatprep.subr.mxu0 0.0
  %1430 = vmatpush2.msra.mxu0 0.0
  %1431 = vmatprep.subr.mxu0 0.0
  %1432 = vmatpush2.msra.mxu0 0.0
  %1433 = vmatprep.subr.mxu0 0.0
  %1434 = vmatpush2.msra.mxu0 0.0
  %1435 = vmatprep.subr.mxu0 0.0
  %1436 = vmatpush2.msra.mxu0 0.0
  %1437 = vmatprep.subr.mxu0 0.0
  %1438 = vmatpush2.msra.mxu0 0.0
  %1439 = vmatprep.subr.mxu0 0.0
  %1440 = vmatpush2.msra.mxu0 0.0
  %1441 = vmatprep.subr.mxu0 0.0
  %1442 = vmatpush2.msra.mxu0 0.0
  %1443 = vmatprep.subr.mxu0 0.0
  %1444 = vmatpush2.msra.mxu0 0.0
  %1445 = vmatprep.mubr.f32.mxu0 0.0
  %1446 = vmatmul.mubr.f32.gmra.mxu0 %v1379
  %v1447 = vpop.f32.mrf.mxu0
  %v1448 = vadd.f32 0.0, %v1447
  %v1449 = vpop.f32.mrf.mxu0
  %1450 = vdwg.mxu0
  %v1451 = vadd.f32 %v1149, %v1448
  %v1452 = vxor.u32 %v1451, 2147483648
  %v1453 = vmul.f32 %v1452, 1.442695
  %v1454 = vpow.pop %v1453
  %v1455 = vadd.f32 %v1454, 1.0
  %v1456 = vrcp.pop %v1455
  %v1457 = vmul.f32 1.0, %v1456
  %v1458 = vtanh.pop %v1451
  %v1459 = vmul.f32 %v1457, %v1369
  %1461 = vrot.lane.b32.xlu0 %v1458, 64
  %v1462 = vpop.permute.xlu0 %1461
  %v1464 = vmul.f32 %v1457, %v1462
  %1466 = vrot.lane.b32.xlu0 %v1464, 32
  %v1467 = vpop.permute.xlu0 %1466
  %v1469 = vadd.f32 %v1459, %v1467
  %v1470 = vtanh.pop %v1469
  %1472 = vrot.lane.b32.xlu0 %v1470, 64
  %v1473 = vpop.permute.xlu0 %1472
  %v1475 = vmul.f32 %v1457, %v1473
  %1477 = vrot.lane.b32.xlu0 %v1475, 32
  %v1478 = vpop.permute.xlu0 %1477
  %v1479 = vsel %vm183, %v1478, 0
  %1481 = vmatprep.subr.mxu0 0.0
  %1482 = vmatpush1.msra.mxu0 0.0
  %1483 = vmatprep.subr.mxu0 0.0
  %1484 = vmatpush1.msra.mxu0 0.0
  %1485 = vmatprep.subr.mxu0 0.0
  %1486 = vmatpush1.msra.mxu0 0.0
  %1487 = vmatprep.subr.mxu0 0.0
  %1488 = vmatpush1.msra.mxu0 0.0
  %1489 = vmatprep.subr.mxu0 0.0
  %1490 = vmatpush1.msra.mxu0 0.0
  %1491 = vmatprep.subr.mxu0 0.0
  %1492 = vmatpush1.msra.mxu0 0.0
  %1493 = vmatprep.subr.mxu0 0.0
  %1494 = vmatpush1.msra.mxu0 0.0
  %1495 = vmatprep.subr.mxu0 0.0
  %1496 = vmatpush1.msra.mxu0 0.0
  %1497 = vmatprep.subr.mxu0 0.0
  %1498 = vmatpush1.msra.mxu0 0.0
  %1499 = vmatprep.subr.mxu0 0.0
  %1500 = vmatpush1.msra.mxu0 0.0
  %1501 = vmatprep.subr.mxu0 0.0
  %1502 = vmatpush1.msra.mxu0 0.0
  %1503 = vmatprep.subr.mxu0 0.0
  %1504 = vmatpush1.msra.mxu0 0.0
  %1505 = vmatprep.subr.mxu0 0.0
  %1506 = vmatpush1.msra.mxu0 %v1180
  %1507 = vmatprep.subr.mxu0 0.0
  %1508 = vmatpush1.msra.mxu0 %v1179
  %1509 = vmatprep.subr.mxu0 0.0
  %1510 = vmatpush1.msra.mxu0 %v1178
  %1511 = vmatprep.subr.mxu0 0.0
  %1512 = vmatpush1.msra.mxu0 %v1177
  %1513 = vmatprep.subr.mxu0 0.0
  %1514 = vmatpush2.msra.mxu0 0.0
  %1515 = vmatprep.subr.mxu0 0.0
  %1516 = vmatpush2.msra.mxu0 0.0
  %1517 = vmatprep.subr.mxu0 0.0
  %1518 = vmatpush2.msra.mxu0 0.0
  %1519 = vmatprep.subr.mxu0 0.0
  %1520 = vmatpush2.msra.mxu0 0.0
  %1521 = vmatprep.subr.mxu0 0.0
  %1522 = vmatpush2.msra.mxu0 0.0
  %1523 = vmatprep.subr.mxu0 0.0
  %1524 = vmatpush2.msra.mxu0 0.0
  %1525 = vmatprep.subr.mxu0 0.0
  %1526 = vmatpush2.msra.mxu0 0.0
  %1527 = vmatprep.subr.mxu0 0.0
  %1528 = vmatpush2.msra.mxu0 0.0
  %1529 = vmatprep.subr.mxu0 0.0
  %1530 = vmatpush2.msra.mxu0 0.0
  %1531 = vmatprep.subr.mxu0 0.0
  %1532 = vmatpush2.msra.mxu0 0.0
  %1533 = vmatprep.subr.mxu0 0.0
  %1534 = vmatpush2.msra.mxu0 0.0
  %1535 = vmatprep.subr.mxu0 0.0
  %1536 = vmatpush2.msra.mxu0 0.0
  %1537 = vmatprep.subr.mxu0 0.0
  %1538 = vmatpush2.msra.mxu0 0.0
  %1539 = vmatprep.subr.mxu0 0.0
  %1540 = vmatpush2.msra.mxu0 0.0
  %1541 = vmatprep.subr.mxu0 0.0
  %1542 = vmatpush2.msra.mxu0 0.0
  %1543 = vmatprep.subr.mxu0 0.0
  %1544 = vmatpush2.msra.mxu0 0.0
  %1545 = vmatprep.mubr.f32.mxu0 0.0
  %1546 = vmatmul.mubr.f32.gmra.mxu0 %v1479
  %v1547 = vpop.f32.mrf.mxu0
  %v1548 = vadd.f32 0.0, %v1547
  %v1549 = vpop.f32.mrf.mxu0
  %1550 = vdwg.mxu0
  %v1551 = vadd.f32 %v1154, %v1548
  %v1552 = vxor.u32 %v1551, 2147483648
  %v1553 = vmul.f32 %v1552, 1.442695
  %v1554 = vpow.pop %v1553
  %v1555 = vadd.f32 %v1554, 1.0
  %v1556 = vrcp.pop %v1555
  %v1557 = vmul.f32 1.0, %v1556
  %v1558 = vtanh.pop %v1551
  %v1559 = vmul.f32 %v1557, %v1469
  %1561 = vrot.lane.b32.xlu0 %v1558, 64
  %v1562 = vpop.permute.xlu0 %1561
  %v1564 = vmul.f32 %v1557, %v1562
  %1566 = vrot.lane.b32.xlu0 %v1564, 32
  %v1567 = vpop.permute.xlu0 %1566
  %v1569 = vadd.f32 %v1559, %v1567
  %v1570 = vtanh.pop %v1569
  %1572 = vrot.lane.b32.xlu0 %v1570, 64
  %v1573 = vpop.permute.xlu0 %1572
  %v1575 = vmul.f32 %v1557, %v1573
  %1577 = vrot.lane.b32.xlu0 %v1575, 32
  %v1578 = vpop.permute.xlu0 %1577
  %v1579 = vsel %vm183, %v1578, 0
  %1581 = vmatprep.subr.mxu0 0.0
  %1582 = vmatpush1.msra.mxu0 0.0
  %1583 = vmatprep.subr.mxu0 0.0
  %1584 = vmatpush1.msra.mxu0 0.0
  %1585 = vmatprep.subr.mxu0 0.0
  %1586 = vmatpush1.msra.mxu0 0.0
  %1587 = vmatprep.subr.mxu0 0.0
  %1588 = vmatpush1.msra.mxu0 0.0
  %1589 = vmatprep.subr.mxu0 0.0
  %1590 = vmatpush1.msra.mxu0 0.0
  %1591 = vmatprep.subr.mxu0 0.0
  %1592 = vmatpush1.msra.mxu0 0.0
  %1593 = vmatprep.subr.mxu0 0.0
  %1594 = vmatpush1.msra.mxu0 0.0
  %1595 = vmatprep.subr.mxu0 0.0
  %1596 = vmatpush1.msra.mxu0 0.0
  %1597 = vmatprep.subr.mxu0 0.0
  %1598 = vmatpush1.msra.mxu0 0.0
  %1599 = vmatprep.subr.mxu0 0.0
  %1600 = vmatpush1.msra.mxu0 0.0
  %1601 = vmatprep.subr.mxu0 0.0
  %1602 = vmatpush1.msra.mxu0 0.0
  %1603 = vmatprep.subr.mxu0 0.0
  %1604 = vmatpush1.msra.mxu0 0.0
  %1605 = vmatprep.subr.mxu0 0.0
  %1606 = vmatpush1.msra.mxu0 %v1180
  %1607 = vmatprep.subr.mxu0 0.0
  %1608 = vmatpush1.msra.mxu0 %v1179
  %1609 = vmatprep.subr.mxu0 0.0
  %1610 = vmatpush1.msra.mxu0 %v1178
  %1611 = vmatprep.subr.mxu0 0.0
  %1612 = vmatpush1.msra.mxu0 %v1177
  %1613 = vmatprep.subr.mxu0 0.0
  %1614 = vmatpush2.msra.mxu0 0.0
  %1615 = vmatprep.subr.mxu0 0.0
  %1616 = vmatpush2.msra.mxu0 0.0
  %1617 = vmatprep.subr.mxu0 0.0
  %1618 = vmatpush2.msra.mxu0 0.0
  %1619 = vmatprep.subr.mxu0 0.0
  %1620 = vmatpush2.msra.mxu0 0.0
  %1621 = vmatprep.subr.mxu0 0.0
  %1622 = vmatpush2.msra.mxu0 0.0
  %1623 = vmatprep.subr.mxu0 0.0
  %1624 = vmatpush2.msra.mxu0 0.0
  %1625 = vmatprep.subr.mxu0 0.0
  %1626 = vmatpush2.msra.mxu0 0.0
  %1627 = vmatprep.subr.mxu0 0.0
  %1628 = vmatpush2.msra.mxu0 0.0
  %1629 = vmatprep.subr.mxu0 0.0
  %1630 = vmatpush2.msra.mxu0 0.0
  %1631 = vmatprep.subr.mxu0 0.0
  %1632 = vmatpush2.msra.mxu0 0.0
  %1633 = vmatprep.subr.mxu0 0.0
  %1634 = vmatpush2.msra.mxu0 0.0
  %1635 = vmatprep.subr.mxu0 0.0
  %1636 = vmatpush2.msra.mxu0 0.0
  %1637 = vmatprep.subr.mxu0 0.0
  %1638 = vmatpush2.msra.mxu0 0.0
  %1639 = vmatprep.subr.mxu0 0.0
  %1640 = vmatpush2.msra.mxu0 0.0
  %1641 = vmatprep.subr.mxu0 0.0
  %1642 = vmatpush2.msra.mxu0 0.0
  %1643 = vmatprep.subr.mxu0 0.0
  %1644 = vmatpush2.msra.mxu0 0.0
  %1645 = vmatprep.mubr.f32.mxu0 0.0
  %1646 = vmatmul.mubr.f32.gmra.mxu0 %v1579
  %v1647 = vpop.f32.mrf.mxu0
  %v1648 = vadd.f32 0.0, %v1647
  %v1649 = vpop.f32.mrf.mxu0
  %1650 = vdwg.mxu0
  %v1651 = vadd.f32 %v1159, %v1648
  %v1652 = vxor.u32 %v1651, 2147483648
  %v1653 = vmul.f32 %v1652, 1.442695
  %v1654 = vpow.pop %v1653
  %v1655 = vadd.f32 %v1654, 1.0
  %v1656 = vrcp.pop %v1655
  %v1657 = vmul.f32 1.0, %v1656
  %v1658 = vtanh.pop %v1651
  %v1659 = vmul.f32 %v1657, %v1569
  %1661 = vrot.lane.b32.xlu0 %v1658, 64
  %v1662 = vpop.permute.xlu0 %1661
  %v1664 = vmul.f32 %v1657, %v1662
  %1666 = vrot.lane.b32.xlu0 %v1664, 32
  %v1667 = vpop.permute.xlu0 %1666
  %v1669 = vadd.f32 %v1659, %v1667
  %v1670 = vtanh.pop %v1669
  %1672 = vrot.lane.b32.xlu0 %v1670, 64
  %v1673 = vpop.permute.xlu0 %1672
  %v1675 = vmul.f32 %v1657, %v1673
  %1677 = vrot.lane.b32.xlu0 %v1675, 32
  %v1678 = vpop.permute.xlu0 %1677
  %v1679 = vsel %vm183, %v1678, 0
  %1681 = vmatprep.subr.mxu0 0.0
  %1682 = vmatpush1.msra.mxu0 0.0
  %1683 = vmatprep.subr.mxu0 0.0
  %1684 = vmatpush1.msra.mxu0 0.0
  %1685 = vmatprep.subr.mxu0 0.0
  %1686 = vmatpush1.msra.mxu0 0.0
  %1687 = vmatprep.subr.mxu0 0.0
  %1688 = vmatpush1.msra.mxu0 0.0
  %1689 = vmatprep.subr.mxu0 0.0
  %1690 = vmatpush1.msra.mxu0 0.0
  %1691 = vmatprep.subr.mxu0 0.0
  %1692 = vmatpush1.msra.mxu0 0.0
  %1693 = vmatprep.subr.mxu0 0.0
  %1694 = vmatpush1.msra.mxu0 0.0
  %1695 = vmatprep.subr.mxu0 0.0
  %1696 = vmatpush1.msra.mxu0 0.0
  %1697 = vmatprep.subr.mxu0 0.0
  %1698 = vmatpush1.msra.mxu0 0.0
  %1699 = vmatprep.subr.mxu0 0.0
  %1700 = vmatpush1.msra.mxu0 0.0
  %1701 = vmatprep.subr.mxu0 0.0
  %1702 = vmatpush1.msra.mxu0 0.0
  %1703 = vmatprep.subr.mxu0 0.0
  %1704 = vmatpush1.msra.mxu0 0.0
  %1705 = vmatprep.subr.mxu0 0.0
  %1706 = vmatpush1.msra.mxu0 %v1180
  %1707 = vmatprep.subr.mxu0 0.0
  %1708 = vmatpush1.msra.mxu0 %v1179
  %1709 = vmatprep.subr.mxu0 0.0
  %1710 = vmatpush1.msra.mxu0 %v1178
  %1711 = vmatprep.subr.mxu0 0.0
  %1712 = vmatpush1.msra.mxu0 %v1177
  %1713 = vmatprep.subr.mxu0 0.0
  %1714 = vmatpush2.msra.mxu0 0.0
  %1715 = vmatprep.subr.mxu0 0.0
  %1716 = vmatpush2.msra.mxu0 0.0
  %1717 = vmatprep.subr.mxu0 0.0
  %1718 = vmatpush2.msra.mxu0 0.0
  %1719 = vmatprep.subr.mxu0 0.0
  %1720 = vmatpush2.msra.mxu0 0.0
  %1721 = vmatprep.subr.mxu0 0.0
  %1722 = vmatpush2.msra.mxu0 0.0
  %1723 = vmatprep.subr.mxu0 0.0
  %1724 = vmatpush2.msra.mxu0 0.0
  %1725 = vmatprep.subr.mxu0 0.0
  %1726 = vmatpush2.msra.mxu0 0.0
  %1727 = vmatprep.subr.mxu0 0.0
  %1728 = vmatpush2.msra.mxu0 0.0
  %1729 = vmatprep.subr.mxu0 0.0
  %1730 = vmatpush2.msra.mxu0 0.0
  %1731 = vmatprep.subr.mxu0 0.0
  %1732 = vmatpush2.msra.mxu0 0.0
  %1733 = vmatprep.subr.mxu0 0.0
  %1734 = vmatpush2.msra.mxu0 0.0
  %1735 = vmatprep.subr.mxu0 0.0
  %1736 = vmatpush2.msra.mxu0 0.0
  %1737 = vmatprep.subr.mxu0 0.0
  %1738 = vmatpush2.msra.mxu0 0.0
  %1739 = vmatprep.subr.mxu0 0.0
  %1740 = vmatpush2.msra.mxu0 0.0
  %1741 = vmatprep.subr.mxu0 0.0
  %1742 = vmatpush2.msra.mxu0 0.0
  %1743 = vmatprep.subr.mxu0 0.0
  %1744 = vmatpush2.msra.mxu0 0.0
  %1745 = vmatprep.mubr.f32.mxu0 0.0
  %1746 = vmatmul.mubr.f32.gmra.mxu0 %v1679
  %v1747 = vpop.f32.mrf.mxu0
  %v1748 = vadd.f32 0.0, %v1747
  %v1749 = vpop.f32.mrf.mxu0
  %1750 = vdwg.mxu0
  %v1751 = vadd.f32 %v1164, %v1748
  %v1752 = vxor.u32 %v1751, 2147483648
  %v1753 = vmul.f32 %v1752, 1.442695
  %v1754 = vpow.pop %v1753
  %v1755 = vadd.f32 %v1754, 1.0
  %v1756 = vrcp.pop %v1755
  %v1757 = vmul.f32 1.0, %v1756
  %v1758 = vtanh.pop %v1751
  %v1759 = vmul.f32 %v1757, %v1669
  %1761 = vrot.lane.b32.xlu0 %v1758, 64
  %v1762 = vpop.permute.xlu0 %1761
  %v1764 = vmul.f32 %v1757, %v1762
  %1766 = vrot.lane.b32.xlu0 %v1764, 32
  %v1767 = vpop.permute.xlu0 %1766
  %v1769 = vadd.f32 %v1759, %v1767
  %v1770 = vtanh.pop %v1769
  %1772 = vrot.lane.b32.xlu0 %v1770, 64
  %v1773 = vpop.permute.xlu0 %1772
  %v1775 = vmul.f32 %v1757, %v1773
  %1777 = vrot.lane.b32.xlu0 %v1775, 32
  %v1778 = vpop.permute.xlu0 %1777
  %v1779 = vsel %vm183, %v1778, 0
  %1781 = vmatprep.subr.mxu0 0.0
  %1782 = vmatpush1.msra.mxu0 0.0
  %1783 = vmatprep.subr.mxu0 0.0
  %1784 = vmatpush1.msra.mxu0 0.0
  %1785 = vmatprep.subr.mxu0 0.0
  %1786 = vmatpush1.msra.mxu0 0.0
  %1787 = vmatprep.subr.mxu0 0.0
  %1788 = vmatpush1.msra.mxu0 0.0
  %1789 = vmatprep.subr.mxu0 0.0
  %1790 = vmatpush1.msra.mxu0 0.0
  %1791 = vmatprep.subr.mxu0 0.0
  %1792 = vmatpush1.msra.mxu0 0.0
  %1793 = vmatprep.subr.mxu0 0.0
  %1794 = vmatpush1.msra.mxu0 0.0
  %1795 = vmatprep.subr.mxu0 0.0
  %1796 = vmatpush1.msra.mxu0 0.0
  %1797 = vmatprep.subr.mxu0 0.0
  %1798 = vmatpush1.msra.mxu0 0.0
  %1799 = vmatprep.subr.mxu0 0.0
  %1800 = vmatpush1.msra.mxu0 0.0
  %1801 = vmatprep.subr.mxu0 0.0
  %1802 = vmatpush1.msra.mxu0 0.0
  %1803 = vmatprep.subr.mxu0 0.0
  %1804 = vmatpush1.msra.mxu0 0.0
  %1805 = vmatprep.subr.mxu0 0.0
  %1806 = vmatpush1.msra.mxu0 %v1180
  %1807 = vmatprep.subr.mxu0 0.0
  %1808 = vmatpush1.msra.mxu0 %v1179
  %1809 = vmatprep.subr.mxu0 0.0
  %1810 = vmatpush1.msra.mxu0 %v1178
  %1811 = vmatprep.subr.mxu0 0.0
  %1812 = vmatpush1.msra.mxu0 %v1177
  %1813 = vmatprep.subr.mxu0 0.0
  %1814 = vmatpush2.msra.mxu0 0.0
  %1815 = vmatprep.subr.mxu0 0.0
  %1816 = vmatpush2.msra.mxu0 0.0
  %1817 = vmatprep.subr.mxu0 0.0
  %1818 = vmatpush2.msra.mxu0 0.0
  %1819 = vmatprep.subr.mxu0 0.0
  %1820 = vmatpush2.msra.mxu0 0.0
  %1821 = vmatprep.subr.mxu0 0.0
  %1822 = vmatpush2.msra.mxu0 0.0
  %1823 = vmatprep.subr.mxu0 0.0
  %1824 = vmatpush2.msra.mxu0 0.0
  %1825 = vmatprep.subr.mxu0 0.0
  %1826 = vmatpush2.msra.mxu0 0.0
  %1827 = vmatprep.subr.mxu0 0.0
  %1828 = vmatpush2.msra.mxu0 0.0
  %1829 = vmatprep.subr.mxu0 0.0
  %1830 = vmatpush2.msra.mxu0 0.0
  %1831 = vmatprep.subr.mxu0 0.0
  %1832 = vmatpush2.msra.mxu0 0.0
  %1833 = vmatprep.subr.mxu0 0.0
  %1834 = vmatpush2.msra.mxu0 0.0
  %1835 = vmatprep.subr.mxu0 0.0
  %1836 = vmatpush2.msra.mxu0 0.0
  %1837 = vmatprep.subr.mxu0 0.0
  %1838 = vmatpush2.msra.mxu0 0.0
  %1839 = vmatprep.subr.mxu0 0.0
  %1840 = vmatpush2.msra.mxu0 0.0
  %1841 = vmatprep.subr.mxu0 0.0
  %1842 = vmatpush2.msra.mxu0 0.0
  %1843 = vmatprep.subr.mxu0 0.0
  %1844 = vmatpush2.msra.mxu0 0.0
  %1845 = vmatprep.mubr.f32.mxu0 0.0
  %1846 = vmatmul.mubr.f32.gmra.mxu0 %v1779
  %v1847 = vpop.f32.mrf.mxu0
  %v1848 = vadd.f32 0.0, %v1847
  %v1849 = vpop.f32.mrf.mxu0
  %1850 = vdwg.mxu0
  %v1851 = vadd.f32 %v1169, %v1848
  %v1852 = vxor.u32 %v1851, 2147483648
  %v1853 = vmul.f32 %v1852, 1.442695
  %v1854 = vpow.pop %v1853
  %v1855 = vadd.f32 %v1854, 1.0
  %v1856 = vrcp.pop %v1855
  %v1857 = vmul.f32 1.0, %v1856
  %v1858 = vtanh.pop %v1851
  %v1859 = vmul.f32 %v1857, %v1769
  %1861 = vrot.lane.b32.xlu0 %v1858, 64
  %v1862 = vpop.permute.xlu0 %1861
  %v1864 = vmul.f32 %v1857, %v1862
  %1866 = vrot.lane.b32.xlu0 %v1864, 32
  %v1867 = vpop.permute.xlu0 %1866
  %v1869 = vadd.f32 %v1859, %v1867
  %v1870 = vtanh.pop %v1869
  %1872 = vrot.lane.b32.xlu0 %v1870, 64
  %v1873 = vpop.permute.xlu0 %1872
  %v1875 = vmul.f32 %v1857, %v1873
  %1877 = vrot.lane.b32.xlu0 %v1875, 32
  %v1878 = vpop.permute.xlu0 %1877
  %v1879 = vsel %vm183, %v1878, 0
  %1881 = vmatprep.subr.mxu0 0.0
  %1882 = vmatpush1.msra.mxu0 0.0
  %1883 = vmatprep.subr.mxu0 0.0
  %1884 = vmatpush1.msra.mxu0 0.0
  %1885 = vmatprep.subr.mxu0 0.0
  %1886 = vmatpush1.msra.mxu0 0.0
  %1887 = vmatprep.subr.mxu0 0.0
  %1888 = vmatpush1.msra.mxu0 0.0
  %1889 = vmatprep.subr.mxu0 0.0
  %1890 = vmatpush1.msra.mxu0 0.0
  %1891 = vmatprep.subr.mxu0 0.0
  %1892 = vmatpush1.msra.mxu0 0.0
  %1893 = vmatprep.subr.mxu0 0.0
  %1894 = vmatpush1.msra.mxu0 0.0
  %1895 = vmatprep.subr.mxu0 0.0
  %1896 = vmatpush1.msra.mxu0 0.0
  %1897 = vmatprep.subr.mxu0 0.0
  %1898 = vmatpush1.msra.mxu0 0.0
  %1899 = vmatprep.subr.mxu0 0.0
  %1900 = vmatpush1.msra.mxu0 0.0
  %1901 = vmatprep.subr.mxu0 0.0
  %1902 = vmatpush1.msra.mxu0 0.0
  %1903 = vmatprep.subr.mxu0 0.0
  %1904 = vmatpush1.msra.mxu0 0.0
  %1905 = vmatprep.subr.mxu0 0.0
  %1906 = vmatpush1.msra.mxu0 %v1180
  %1907 = vmatprep.subr.mxu0 0.0
  %1908 = vmatpush1.msra.mxu0 %v1179
  %1909 = vmatprep.subr.mxu0 0.0
  %1910 = vmatpush1.msra.mxu0 %v1178
  %1911 = vmatprep.subr.mxu0 0.0
  %1912 = vmatpush1.msra.mxu0 %v1177
  %1913 = vmatprep.subr.mxu0 0.0
  %1914 = vmatpush2.msra.mxu0 0.0
  %1915 = vmatprep.subr.mxu0 0.0
  %1916 = vmatpush2.msra.mxu0 0.0
  %1917 = vmatprep.subr.mxu0 0.0
  %1918 = vmatpush2.msra.mxu0 0.0
  %1919 = vmatprep.subr.mxu0 0.0
  %1920 = vmatpush2.msra.mxu0 0.0
  %1921 = vmatprep.subr.mxu0 0.0
  %1922 = vmatpush2.msra.mxu0 0.0
  %1923 = vmatprep.subr.mxu0 0.0
  %1924 = vmatpush2.msra.mxu0 0.0
  %1925 = vmatprep.subr.mxu0 0.0
  %1926 = vmatpush2.msra.mxu0 0.0
  %1927 = vmatprep.subr.mxu0 0.0
  %1928 = vmatpush2.msra.mxu0 0.0
  %1929 = vmatprep.subr.mxu0 0.0
  %1930 = vmatpush2.msra.mxu0 0.0
  %1931 = vmatprep.subr.mxu0 0.0
  %1932 = vmatpush2.msra.mxu0 0.0
  %1933 = vmatprep.subr.mxu0 0.0
  %1934 = vmatpush2.msra.mxu0 0.0
  %1935 = vmatprep.subr.mxu0 0.0
  %1936 = vmatpush2.msra.mxu0 0.0
  %1937 = vmatprep.subr.mxu0 0.0
  %1938 = vmatpush2.msra.mxu0 0.0
  %1939 = vmatprep.subr.mxu0 0.0
  %1940 = vmatpush2.msra.mxu0 0.0
  %1941 = vmatprep.subr.mxu0 0.0
  %1942 = vmatpush2.msra.mxu0 0.0
  %1943 = vmatprep.subr.mxu0 0.0
  %1944 = vmatpush2.msra.mxu0 0.0
  %1945 = vmatprep.mubr.f32.mxu0 0.0
  %1946 = vmatmul.mubr.f32.gmra.mxu0 %v1879
  %v1947 = vpop.f32.mrf.mxu0
  %v1948 = vadd.f32 0.0, %v1947
  %v1949 = vpop.f32.mrf.mxu0
  %1950 = vdwg.mxu0
  %v1951 = vadd.f32 %v1174, %v1948
  %v1952 = vxor.u32 %v1951, 2147483648
  %v1953 = vmul.f32 %v1952, 1.442695
  %v1954 = vpow.pop %v1953
  %v1955 = vadd.f32 %v1954, 1.0
  %v1956 = vrcp.pop %v1955
  %v1957 = vmul.f32 1.0, %v1956
  %v1958 = vtanh.pop %v1951
  %v1959 = vmul.f32 %v1957, %v1869
  %1961 = vrot.lane.b32.xlu0 %v1958, 64
  %v1962 = vpop.permute.xlu0 %1961
  %v1964 = vmul.f32 %v1957, %v1962
  %1966 = vrot.lane.b32.xlu0 %v1964, 32
  %v1967 = vpop.permute.xlu0 %1966
  %v1969 = vadd.f32 %v1959, %v1967
  %v1970 = vtanh.pop %v1969
  %1972 = vrot.lane.b32.xlu0 %v1970, 64
  %v1973 = vpop.permute.xlu0 %1972
  %v1975 = vmul.f32 %v1957, %v1973
  %v1976 = vld [vmem:[%s7] sm:$0xff]
  %v1977 = vld [vmem:[%s7 + $0x8] sm:$0xff]
  %v1978 = vld [vmem:[%s7 + $0x10] sm:$0xff]
  %v1979 = vld [vmem:[%s7 + $0x18] sm:$0xff]
  %v1980 = vld [vmem:[%s8] sm:$0x1]
  %v1982 = vlaneseq
  %v1983 = vshrl.u32 %v1982, 7
  %v1984 = vsub.s32 0, %v1983
  %v1985 = vrot.slane %v1980, %v1984
  %1988 = vrot.lane.b32.xlu0 %v1975, 32
  %v1989 = vpop.permute.xlu0 %1988
  %v1990 = vsel %vm183, %v1989, 0
  %1992 = vmatprep.subr.mxu0 0.0
  %1993 = vmatpush1.msra.mxu0 0.0
  %1994 = vmatprep.subr.mxu0 0.0
  %1995 = vmatpush1.msra.mxu0 0.0
  %1996 = vmatprep.subr.mxu0 0.0
  %1997 = vmatpush1.msra.mxu0 0.0
  %1998 = vmatprep.subr.mxu0 0.0
  %1999 = vmatpush1.msra.mxu0 0.0
  %2000 = vmatprep.subr.mxu0 0.0
  %2001 = vmatpush1.msra.mxu0 0.0
  %2002 = vmatprep.subr.mxu0 0.0
  %2003 = vmatpush1.msra.mxu0 0.0
  %2004 = vmatprep.subr.mxu0 0.0
  %2005 = vmatpush1.msra.mxu0 0.0
  %2006 = vmatprep.subr.mxu0 0.0
  %2007 = vmatpush1.msra.mxu0 0.0
  %2008 = vmatprep.subr.mxu0 0.0
  %2009 = vmatpush1.msra.mxu0 0.0
  %2010 = vmatprep.subr.mxu0 0.0
  %2011 = vmatpush1.msra.mxu0 0.0
  %2012 = vmatprep.subr.mxu0 0.0
  %2013 = vmatpush1.msra.mxu0 0.0
  %2014 = vmatprep.subr.mxu0 0.0
  %2015 = vmatpush1.msra.mxu0 0.0
  %2016 = vmatprep.subr.mxu0 0.0
  %2017 = vmatpush1.msra.mxu0 %v1979
  %2018 = vmatprep.subr.mxu0 0.0
  %2019 = vmatpush1.msra.mxu0 %v1978
  %2020 = vmatprep.subr.mxu0 0.0
  %2021 = vmatpush1.msra.mxu0 %v1977
  %2022 = vmatprep.subr.mxu0 0.0
  %2023 = vmatpush1.msra.mxu0 %v1976
  %2024 = vmatprep.subr.mxu0 0.0
  %2025 = vmatpush2.msra.mxu0 0.0
  %2026 = vmatprep.subr.mxu0 0.0
  %2027 = vmatpush2.msra.mxu0 0.0
  %2028 = vmatprep.subr.mxu0 0.0
  %2029 = vmatpush2.msra.mxu0 0.0
  %2030 = vmatprep.subr.mxu0 0.0
  %2031 = vmatpush2.msra.mxu0 0.0
  %2032 = vmatprep.subr.mxu0 0.0
  %2033 = vmatpush2.msra.mxu0 0.0
  %2034 = vmatprep.subr.mxu0 0.0
  %2035 = vmatpush2.msra.mxu0 0.0
  %2036 = vmatprep.subr.mxu0 0.0
  %2037 = vmatpush2.msra.mxu0 0.0
  %2038 = vmatprep.subr.mxu0 0.0
  %2039 = vmatpush2.msra.mxu0 0.0
  %2040 = vmatprep.subr.mxu0 0.0
  %2041 = vmatpush2.msra.mxu0 0.0
  %2042 = vmatprep.subr.mxu0 0.0
  %2043 = vmatpush2.msra.mxu0 0.0
  %2044 = vmatprep.subr.mxu0 0.0
  %2045 = vmatpush2.msra.mxu0 0.0
  %2046 = vmatprep.subr.mxu0 0.0
  %2047 = vmatpush2.msra.mxu0 0.0
  %2048 = vmatprep.subr.mxu0 0.0
  %2049 = vmatpush2.msra.mxu0 0.0
  %2050 = vmatprep.subr.mxu0 0.0
  %2051 = vmatpush2.msra.mxu0 0.0
  %2052 = vmatprep.subr.mxu0 0.0
  %2053 = vmatpush2.msra.mxu0 0.0
  %2054 = vmatprep.subr.mxu0 0.0
  %2055 = vmatpush2.msra.mxu0 0.0
  %2056 = vmatprep.mubr.f32.mxu0 0.0
  %2057 = vmatmul.mubr.f32.gmra.mxu0 %v1990
  %v2058 = vpop.f32.mrf.mxu0
  %v2059 = vadd.f32 %v1985, %v2058
  %v2060 = vpop.f32.mrf.mxu0
  %2061 = vdwg.mxu0
  %vm2062 = vcmask 80896
  %2063 = vst.msk [vmem:[%s9] sm:$0xff] %vm2062, %v2059
  // Predicated region
  $region38: #{lstm_model_forward.1} parent=0 // pred_check
    _
  $region39: #{lstm_model_forward.1} parent=0 // pred_check_branch
    %2065 = sbr.rel (0) target = $region41
  $region40: #{lstm_model_forward.1} parent=0 // pred_region
    _
  $region41: #{lstm_model_forward.1} parent=0 // pred_fallthru
    _
  // Predicated region
  $region42: #{lstm_model_forward.1} parent=0 // pred_check
    _
  $region43: #{lstm_model_forward.1} parent=0 // pred_check_branch
    %2067 = sbr.rel (0) target = $region45
  $region44: #{lstm_model_forward.1} parent=0 // pred_region
    _
  $region45: #{lstm_model_forward.1} parent=0 // pred_fallthru
    _

</llo_original>
